<compile_context>
chip_gen: v5e
topology: v5e:2x2
jax: 0.10.0
libtpu: 0.0.40
codegen_flags: <defaults>
</compile_context>

<pallas_src>
import jax
import jax.numpy as jnp
from jax.experimental import pallas as pl
from jax.experimental.pallas import tpu as pltpu

N_NODES = 23


def _round_up(x, m):
    return ((x + m - 1) // m) * m


# ----------------------------------------------------------------------------
# Kernel 1: GRU (input_size=1, hidden_size=1, n_layer=1) over all sequences,
#   fused with the mean-over-H feature computation for the GAT branch.
#   Input block is (H, BR, 128): each of the BR*128 scalar sequences sits on a
#   (sublane, lane) slot, H time steps walk the leading axis.
#   Weights are 12 scalars in SMEM: [w_ir, w_iz, w_in, w_hr, w_hz, w_hn,
#   b_ir, b_iz, b_in, b_hr, b_hz, b_hn]  (PyTorch gate order r, z, n).
# ----------------------------------------------------------------------------
def gru_kernel(x_ref, w_ref, h_ref, feat_ref):
    w_ir, w_iz, w_in = w_ref[0], w_ref[1], w_ref[2]
    w_hr, w_hz, w_hn = w_ref[3], w_ref[4], w_ref[5]
    b_ir, b_iz, b_in = w_ref[6], w_ref[7], w_ref[8]
    b_hr, b_hz, b_hn = w_ref[9], w_ref[10], w_ref[11]

    H = x_ref.shape[0]
    h = jnp.zeros(h_ref.shape, jnp.float32)
    acc = jnp.zeros(h_ref.shape, jnp.float32)
    # Static unroll is fine while H is small; switch to lax.fori_loop(unroll=True)
    # if H grows beyond ~32 to avoid instruction-stream blowup.
    for t in range(H):
        x_t = x_ref[t]                                                # (BR, 128) full vregs
        acc = acc + x_t                                               # fused mean-over-H
        r = jax.nn.sigmoid(w_ir * x_t + b_ir + w_hr * h + b_hr)
        z = jax.nn.sigmoid(w_iz * x_t + b_iz + w_hz * h + b_hz)
        n = jnp.tanh(w_in * x_t + b_in + r * (w_hn * h + b_hn))
        h = (1.0 - z) * n + z * h
    h_ref[...] = h
    feat_ref[...] = acc * jnp.float32(1.0 / H)


# ----------------------------------------------------------------------------
# Kernel 2: single-head GAT layer (alpha=0.2) + residual + weighted combine with
#   the GRU branch (x @ yz).sum(-1).  B_TILE batch elements per grid step; the
#   per-element attention stays on 2D (23, 23) tiles (cheap, robust lowering),
#   while the grid-step count (and its ~0.35us/step overhead) drops by B_TILE.
# ----------------------------------------------------------------------------
def gat_combine_kernel(feat_ref, adj_ref, w_ref, a1_ref, a2_ref, x1_ref,
                       yz_ref, o_ref):
    adj = adj_ref[...]                                                # (23, 23)
    W = w_ref[...]                                                    # (23, 23)
    a1 = a1_ref[...]                                                  # (23, 1)
    a2 = a2_ref[...]                                                  # (1, 23)
    y0 = yz_ref[0]
    y1 = yz_ref[1]

    BT = feat_ref.shape[0]
    for b in range(BT):                                               # static unroll, BT small
        X = feat_ref[b]                                               # (23, 23)
        Wh = jnp.dot(X, W, preferred_element_type=jnp.float32)        # (23, 23)
        f = jnp.dot(Wh, a1, preferred_element_type=jnp.float32)       # (23, 1)
        # g[0, j] = sum_k a2[0, k] * Wh[j, k]  (transposed-RHS matmul, no XLU transpose)
        g = jax.lax.dot_general(a2, Wh, (((1,), (1,)), ((), ())),
                                preferred_element_type=jnp.float32)    # (1, 23)

        e = f + g                                                      # (23, 23)
        e = jnp.where(e > 0, e, 0.2 * e)                               # LeakyReLU(0.2)
        e = jnp.where(adj > 0, e, jnp.float32(-9e15))                  # mask by adjacency

        m = jnp.max(e, axis=-1, keepdims=True)
        p = jnp.exp(e - m)
        inv = pl.reciprocal(jnp.sum(p, axis=-1, keepdims=True), approx=True)
        attn = p * inv                                                 # softmax over neighbors

        h_prime = jnp.dot(attn, Wh, preferred_element_type=jnp.float32)  # (23, 23)
        # ELU (clamped exp arg so the unselected branch never overflows) + residual
        elu = jnp.where(h_prime > 0, h_prime,
                        jnp.exp(jnp.minimum(h_prime, 0.0)) - 1.0)
        gat_out = elu + X

        # Combine:  result = x1 * yz[0] + x2 * yz[1]  ==  (cat([x1,x2],-1) @ yz).sum(-1)
        o_ref[b] = y0 * x1_ref[b] + y1 * gat_out


# ----------------------------------------------------------------------------
# Wrapper
# ----------------------------------------------------------------------------
def gru_gat_forward(flow_x, adj, params, *, gru_rows_per_block=256, gat_batch_tile=8):
    bs, n1, n2, H = flow_x.shape
    assert n1 == N_NODES and n2 == N_NODES
    nseq = bs * n1 * n2

    # ---- GRU branch (x.view(-1, H, 1) -> final hidden state) + fused mean(H) ----
    R_total = pl.cdiv(nseq, 128)                       # sequence rows of 128 lanes
    BR = min(gru_rows_per_block, _round_up(R_total, 8))
    R_pad = _round_up(R_total, BR)
    npad = R_pad * 128

    x2d = flow_x.reshape(nseq, H).T                    # (H, nseq), time-major
    x2d = jnp.pad(x2d, ((0, 0), (0, npad - nseq)))
    x3d = x2d.reshape(H, R_pad, 128)                   # (H, R, 128): full (8,128) packing

    h_flat, feat_flat = pl.pallas_call(
        gru_kernel,
        out_shape=(jax.ShapeDtypeStruct((R_pad, 128), jnp.float32),
                   jax.ShapeDtypeStruct((R_pad, 128), jnp.float32)),
        grid=(R_pad // BR,),
        in_specs=[
            pl.BlockSpec((H, BR, 128), lambda i: (0, i, 0)),
            pl.BlockSpec(memory_space=pltpu.MemorySpace.SMEM),          # 12 GRU scalars
        ],
        out_specs=(
            pl.BlockSpec((BR, 128), lambda i: (i, 0)),                  # final hidden
            pl.BlockSpec((BR, 128), lambda i: (i, 0)),                  # mean over H
        ),
        compiler_params=pltpu.CompilerParams(
            dimension_semantics=("parallel",),
            vmem_limit_bytes=32 * 1024 * 1024),
    )(x3d, params["gru_w"])

    x1 = h_flat.reshape(-1)[:nseq].reshape(bs, N_NODES, N_NODES)      # == ouput_n.reshape(-1,23,23)
    feat = feat_flat.reshape(-1)[:nseq].reshape(bs, N_NODES, N_NODES)

    # ---- GAT branch + combine ----
    # TODO(synk): ResGAT source was not provided with the module; a single-head
    # GAT layer (nfeat=nhid=nclass=23, alpha=0.2, dropout=0) + ELU + residual on
    # mean-over-H node features is used as the stand-in for its forward.
    BT = min(gat_batch_tile, bs)
    bs_pad = _round_up(bs, BT)
    if bs_pad != bs:
        pad = ((0, bs_pad - bs), (0, 0), (0, 0))
        feat = jnp.pad(feat, pad)
        x1 = jnp.pad(x1, pad)

    # yz = a / a.sum(dim=0, keepdim=True)
    a_param = params["a"]                                              # (2, 1)
    yz = (a_param / jnp.sum(a_param, axis=0, keepdims=True)).reshape(2)

    out = pl.pallas_call(
        gat_combine_kernel,
        out_shape=jax.ShapeDtypeStruct((bs_pad, N_NODES, N_NODES), jnp.float32),
        grid=(bs_pad // BT,),
        in_specs=[
            pl.BlockSpec((BT, N_NODES, N_NODES), lambda b: (b, 0, 0)),  # feat (mean over H)
            pl.BlockSpec((N_NODES, N_NODES), lambda b: (0, 0)),         # adj
            pl.BlockSpec((N_NODES, N_NODES), lambda b: (0, 0)),         # GAT W
            pl.BlockSpec((N_NODES, 1), lambda b: (0, 0)),               # GAT a1
            pl.BlockSpec((1, N_NODES), lambda b: (0, 0)),               # GAT a2
            pl.BlockSpec((BT, N_NODES, N_NODES), lambda b: (b, 0, 0)),  # x1 (GRU branch)
            pl.BlockSpec(memory_space=pltpu.MemorySpace.SMEM),          # yz (2,)
        ],
        out_specs=pl.BlockSpec((BT, N_NODES, N_NODES), lambda b: (b, 0, 0)),
        compiler_params=pltpu.CompilerParams(
            dimension_semantics=("parallel",)),
    )(feat, adj, params["gat_W"], params["gat_a1"], params["gat_a2"], x1, yz)

    return out[:bs, ..., None]                                         # (bs, 23, 23, 1)


# ----------------------------------------------------------------------------
# Deterministic parameter init (shapes implied by __init__)
# ----------------------------------------------------------------------------
def init_params(key):
    ks = jax.random.split(key, 7)
    s = 1.0  # 1/sqrt(hidden_dim) with hidden_dim = 1  (PyTorch nn.GRU init range)
    gru_w_ih = jax.random.uniform(ks[0], (3,), jnp.float32, -s, s)     # weight_ih_l0 (3,1)
    gru_w_hh = jax.random.uniform(ks[1], (3,), jnp.float32, -s, s)     # weight_hh_l0 (3,1)
    gru_b_ih = jax.random.uniform(ks[2], (3,), jnp.float32, -s, s)     # bias_ih_l0
    gru_b_hh = jax.random.uniform(ks[3], (3,), jnp.float32, -s, s)     # bias_hh_l0
    gru_w = jnp.concatenate([gru_w_ih, gru_w_hh, gru_b_ih, gru_b_hh])  # (12,)

    gat_W = jax.random.uniform(ks[4], (N_NODES, N_NODES), jnp.float32, -0.3, 0.3)
    a_full = jax.random.uniform(ks[5], (2 * N_NODES,), jnp.float32, -0.3, 0.3)
    gat_a1 = a_full[:N_NODES].reshape(N_NODES, 1)
    gat_a2 = a_full[N_NODES:].reshape(1, N_NODES)

    a_param = jax.random.uniform(ks[6], (2, 1), jnp.float32)           # nn.Parameter(torch.rand(2,1))
    return {"gru_w": gru_w, "gat_W": gat_W, "gat_a1": gat_a1,
            "gat_a2": gat_a2, "a": a_param}


if __name__ == "__main__":
    key = jax.random.PRNGKey(0)
    kx, ka, kp = jax.random.split(key, 3)

    bs, H = 2, 8
    flow_x = jax.random.uniform(kx, (bs, N_NODES, N_NODES, H), jnp.float32)
    adj = (jax.random.uniform(ka, (N_NODES, N_NODES)) > 0.5).astype(jnp.float32)
    adj = jnp.maximum(adj, jnp.eye(N_NODES, dtype=jnp.float32))        # self-loops

    params = init_params(kp)
    out = gru_gat_forward(flow_x, adj, params)
    out = jax.block_until_ready(out)
    assert out.shape == (bs, N_NODES, N_NODES, 1), out.shape
    assert bool(jnp.all(jnp.isfinite(out)))
    print("KERNEL_OK")
</pallas_src>

<mosaic_0001>
module attributes {stable_mosaic.version = 11 : i64} {
  func.func @gru_kernel(%arg0: i32, %arg1: memref<8x16x128xf32, #tpu.memory_space<vmem>>, %arg2: memref<12xf32, #tpu.memory_space<smem>>, %arg3: memref<16x128xf32, #tpu.memory_space<vmem>>, %arg4: memref<16x128xf32, #tpu.memory_space<vmem>>) attributes {dimension_semantics = [#tpu.dimension_semantics<parallel>], iteration_bounds = array<i64: 1>, scalar_prefetch = 0 : i64, scratch_operands = 0 : i64, tpu.core_type = #tpu.core_type<tc>, window_params = [{transform_indices = @transform_0, window_bounds = array<i64: 8, 16, 128>}, {transform_indices = @transform_1, window_bounds = array<i64: 12>}, {transform_indices = @transform_2, window_bounds = array<i64: 16, 128>}, {transform_indices = @transform_3, window_bounds = array<i64: 16, 128>}]} {
    %c0 = arith.constant 0 : index
    %0 = memref.load %arg2[%c0] : memref<12xf32, #tpu.memory_space<smem>>
    %c1 = arith.constant 1 : index
    %1 = memref.load %arg2[%c1] : memref<12xf32, #tpu.memory_space<smem>>
    %c2 = arith.constant 2 : index
    %2 = memref.load %arg2[%c2] : memref<12xf32, #tpu.memory_space<smem>>
    %c3 = arith.constant 3 : index
    %3 = memref.load %arg2[%c3] : memref<12xf32, #tpu.memory_space<smem>>
    %c4 = arith.constant 4 : index
    %4 = memref.load %arg2[%c4] : memref<12xf32, #tpu.memory_space<smem>>
    %c5 = arith.constant 5 : index
    %5 = memref.load %arg2[%c5] : memref<12xf32, #tpu.memory_space<smem>>
    %c6 = arith.constant 6 : index
    %6 = memref.load %arg2[%c6] : memref<12xf32, #tpu.memory_space<smem>>
    %c7 = arith.constant 7 : index
    %7 = memref.load %arg2[%c7] : memref<12xf32, #tpu.memory_space<smem>>
    %c8 = arith.constant 8 : index
    %8 = memref.load %arg2[%c8] : memref<12xf32, #tpu.memory_space<smem>>
    %c9 = arith.constant 9 : index
    %9 = memref.load %arg2[%c9] : memref<12xf32, #tpu.memory_space<smem>>
    %c10 = arith.constant 10 : index
    %10 = memref.load %arg2[%c10] : memref<12xf32, #tpu.memory_space<smem>>
    %c11 = arith.constant 11 : index
    %11 = memref.load %arg2[%c11] : memref<12xf32, #tpu.memory_space<smem>>
    %cst = arith.constant 0.000000e+00 : f32
    %12 = vector.broadcast %cst : f32 to vector<16x128xf32>
    %cst_0 = arith.constant 0.000000e+00 : f32
    %13 = vector.broadcast %cst_0 : f32 to vector<16x128xf32>
    %c0_1 = arith.constant 0 : index
    %c0_2 = arith.constant 0 : index
    %c0_3 = arith.constant 0 : index
    %14 = vector.load %arg1[%c0_1, %c0_2, %c0_3] : memref<8x16x128xf32, #tpu.memory_space<vmem>>, vector<1x16x128xf32>
    %15 = vector.shape_cast %14 : vector<1x16x128xf32> to vector<16x128xf32>
    %16 = arith.addf %13, %15 : vector<16x128xf32>
    %17 = vector.broadcast %0 : f32 to vector<16x128xf32>
    %18 = arith.mulf %17, %15 : vector<16x128xf32>
    %19 = vector.broadcast %6 : f32 to vector<16x128xf32>
    %20 = arith.addf %18, %19 : vector<16x128xf32>
    %21 = vector.broadcast %3 : f32 to vector<16x128xf32>
    %22 = arith.mulf %21, %12 : vector<16x128xf32>
    %23 = arith.addf %20, %22 : vector<16x128xf32>
    %24 = vector.broadcast %9 : f32 to vector<16x128xf32>
    %25 = arith.addf %23, %24 : vector<16x128xf32>
    %26 = arith.negf %25 : vector<16x128xf32>
    %27 = math.exp %26 : vector<16x128xf32>
    %cst_4 = arith.constant 1.000000e+00 : f32
    %28 = vector.broadcast %cst_4 : f32 to vector<16x128xf32>
    %29 = arith.addf %28, %27 : vector<16x128xf32>
    %30 = arith.divf %28, %29 : vector<16x128xf32>
    %31 = vector.broadcast %1 : f32 to vector<16x128xf32>
    %32 = arith.mulf %31, %15 : vector<16x128xf32>
    %33 = vector.broadcast %7 : f32 to vector<16x128xf32>
    %34 = arith.addf %32, %33 : vector<16x128xf32>
    %35 = vector.broadcast %4 : f32 to vector<16x128xf32>
    %36 = arith.mulf %35, %12 : vector<16x128xf32>
    %37 = arith.addf %34, %36 : vector<16x128xf32>
    %38 = vector.broadcast %10 : f32 to vector<16x128xf32>
    %39 = arith.addf %37, %38 : vector<16x128xf32>
    %40 = arith.negf %39 : vector<16x128xf32>
    %41 = math.exp %40 : vector<16x128xf32>
    %cst_5 = arith.constant 1.000000e+00 : f32
    %42 = vector.broadcast %cst_5 : f32 to vector<16x128xf32>
    %43 = arith.addf %42, %41 : vector<16x128xf32>
    %44 = arith.divf %42, %43 : vector<16x128xf32>
    %45 = vector.broadcast %2 : f32 to vector<16x128xf32>
    %46 = arith.mulf %45, %15 : vector<16x128xf32>
    %47 = vector.broadcast %8 : f32 to vector<16x128xf32>
    %48 = arith.addf %46, %47 : vector<16x128xf32>
    %49 = vector.broadcast %5 : f32 to vector<16x128xf32>
    %50 = arith.mulf %49, %12 : vector<16x128xf32>
    %51 = vector.broadcast %11 : f32 to vector<16x128xf32>
    %52 = arith.addf %50, %51 : vector<16x128xf32>
    %53 = arith.mulf %30, %52 : vector<16x128xf32>
    %54 = arith.addf %48, %53 : vector<16x128xf32>
    %55 = math.tanh %54 : vector<16x128xf32>
    %cst_6 = arith.constant 1.000000e+00 : f32
    %56 = vector.broadcast %cst_6 : f32 to vector<16x128xf32>
    %57 = arith.subf %56, %44 : vector<16x128xf32>
    %58 = arith.mulf %57, %55 : vector<16x128xf32>
    %59 = arith.mulf %44, %12 : vector<16x128xf32>
    %60 = arith.addf %58, %59 : vector<16x128xf32>
    %c1_7 = arith.constant 1 : index
    %c0_8 = arith.constant 0 : index
    %c0_9 = arith.constant 0 : index
    %61 = vector.load %arg1[%c1_7, %c0_8, %c0_9] : memref<8x16x128xf32, #tpu.memory_space<vmem>>, vector<1x16x128xf32>
    %62 = vector.shape_cast %61 : vector<1x16x128xf32> to vector<16x128xf32>
    %63 = arith.addf %16, %62 : vector<16x128xf32>
    %64 = vector.broadcast %0 : f32 to vector<16x128xf32>
    %65 = arith.mulf %64, %62 : vector<16x128xf32>
    %66 = vector.broadcast %6 : f32 to vector<16x128xf32>
    %67 = arith.addf %65, %66 : vector<16x128xf32>
    %68 = vector.broadcast %3 : f32 to vector<16x128xf32>
    %69 = arith.mulf %68, %60 : vector<16x128xf32>
    %70 = arith.addf %67, %69 : vector<16x128xf32>
    %71 = vector.broadcast %9 : f32 to vector<16x128xf32>
    %72 = arith.addf %70, %71 : vector<16x128xf32>
    %73 = arith.negf %72 : vector<16x128xf32>
    %74 = math.exp %73 : vector<16x128xf32>
    %cst_10 = arith.constant 1.000000e+00 : f32
    %75 = vector.broadcast %cst_10 : f32 to vector<16x128xf32>
    %76 = arith.addf %75, %74 : vector<16x128xf32>
    %77 = arith.divf %75, %76 : vector<16x128xf32>
    %78 = vector.broadcast %1 : f32 to vector<16x128xf32>
    %79 = arith.mulf %78, %62 : vector<16x128xf32>
    %80 = vector.broadcast %7 : f32 to vector<16x128xf32>
    %81 = arith.addf %79, %80 : vector<16x128xf32>
    %82 = vector.broadcast %4 : f32 to vector<16x128xf32>
    %83 = arith.mulf %82, %60 : vector<16x128xf32>
    %84 = arith.addf %81, %83 : vector<16x128xf32>
    %85 = vector.broadcast %10 : f32 to vector<16x128xf32>
    %86 = arith.addf %84, %85 : vector<16x128xf32>
    %87 = arith.negf %86 : vector<16x128xf32>
    %88 = math.exp %87 : vector<16x128xf32>
    %cst_11 = arith.constant 1.000000e+00 : f32
    %89 = vector.broadcast %cst_11 : f32 to vector<16x128xf32>
    %90 = arith.addf %89, %88 : vector<16x128xf32>
    %91 = arith.divf %89, %90 : vector<16x128xf32>
    %92 = vector.broadcast %2 : f32 to vector<16x128xf32>
    %93 = arith.mulf %92, %62 : vector<16x128xf32>
    %94 = vector.broadcast %8 : f32 to vector<16x128xf32>
    %95 = arith.addf %93, %94 : vector<16x128xf32>
    %96 = vector.broadcast %5 : f32 to vector<16x128xf32>
    %97 = arith.mulf %96, %60 : vector<16x128xf32>
    %98 = vector.broadcast %11 : f32 to vector<16x128xf32>
    %99 = arith.addf %97, %98 : vector<16x128xf32>
    %100 = arith.mulf %77, %99 : vector<16x128xf32>
    %101 = arith.addf %95, %100 : vector<16x128xf32>
    %102 = math.tanh %101 : vector<16x128xf32>
    %cst_12 = arith.constant 1.000000e+00 : f32
    %103 = vector.broadcast %cst_12 : f32 to vector<16x128xf32>
    %104 = arith.subf %103, %91 : vector<16x128xf32>
    %105 = arith.mulf %104, %102 : vector<16x128xf32>
    %106 = arith.mulf %91, %60 : vector<16x128xf32>
    %107 = arith.addf %105, %106 : vector<16x128xf32>
    %c2_13 = arith.constant 2 : index
    %c0_14 = arith.constant 0 : index
    %c0_15 = arith.constant 0 : index
    %108 = vector.load %arg1[%c2_13, %c0_14, %c0_15] : memref<8x16x128xf32, #tpu.memory_space<vmem>>, vector<1x16x128xf32>
    %109 = vector.shape_cast %108 : vector<1x16x128xf32> to vector<16x128xf32>
    %110 = arith.addf %63, %109 : vector<16x128xf32>
    %111 = vector.broadcast %0 : f32 to vector<16x128xf32>
    %112 = arith.mulf %111, %109 : vector<16x128xf32>
    %113 = vector.broadcast %6 : f32 to vector<16x128xf32>
    %114 = arith.addf %112, %113 : vector<16x128xf32>
    %115 = vector.broadcast %3 : f32 to vector<16x128xf32>
    %116 = arith.mulf %115, %107 : vector<16x128xf32>
    %117 = arith.addf %114, %116 : vector<16x128xf32>
    %118 = vector.broadcast %9 : f32 to vector<16x128xf32>
    %119 = arith.addf %117, %118 : vector<16x128xf32>
    %120 = arith.negf %119 : vector<16x128xf32>
    %121 = math.exp %120 : vector<16x128xf32>
    %cst_16 = arith.constant 1.000000e+00 : f32
    %122 = vector.broadcast %cst_16 : f32 to vector<16x128xf32>
    %123 = arith.addf %122, %121 : vector<16x128xf32>
    %124 = arith.divf %122, %123 : vector<16x128xf32>
    %125 = vector.broadcast %1 : f32 to vector<16x128xf32>
    %126 = arith.mulf %125, %109 : vector<16x128xf32>
    %127 = vector.broadcast %7 : f32 to vector<16x128xf32>
    %128 = arith.addf %126, %127 : vector<16x128xf32>
    %129 = vector.broadcast %4 : f32 to vector<16x128xf32>
    %130 = arith.mulf %129, %107 : vector<16x128xf32>
    %131 = arith.addf %128, %130 : vector<16x128xf32>
    %132 = vector.broadcast %10 : f32 to vector<16x128xf32>
    %133 = arith.addf %131, %132 : vector<16x128xf32>
    %134 = arith.negf %133 : vector<16x128xf32>
    %135 = math.exp %134 : vector<16x128xf32>
    %cst_17 = arith.constant 1.000000e+00 : f32
    %136 = vector.broadcast %cst_17 : f32 to vector<16x128xf32>
    %137 = arith.addf %136, %135 : vector<16x128xf32>
    %138 = arith.divf %136, %137 : vector<16x128xf32>
    %139 = vector.broadcast %2 : f32 to vector<16x128xf32>
    %140 = arith.mulf %139, %109 : vector<16x128xf32>
    %141 = vector.broadcast %8 : f32 to vector<16x128xf32>
    %142 = arith.addf %140, %141 : vector<16x128xf32>
    %143 = vector.broadcast %5 : f32 to vector<16x128xf32>
    %144 = arith.mulf %143, %107 : vector<16x128xf32>
    %145 = vector.broadcast %11 : f32 to vector<16x128xf32>
    %146 = arith.addf %144, %145 : vector<16x128xf32>
    %147 = arith.mulf %124, %146 : vector<16x128xf32>
    %148 = arith.addf %142, %147 : vector<16x128xf32>
    %149 = math.tanh %148 : vector<16x128xf32>
    %cst_18 = arith.constant 1.000000e+00 : f32
    %150 = vector.broadcast %cst_18 : f32 to vector<16x128xf32>
    %151 = arith.subf %150, %138 : vector<16x128xf32>
    %152 = arith.mulf %151, %149 : vector<16x128xf32>
    %153 = arith.mulf %138, %107 : vector<16x128xf32>
    %154 = arith.addf %152, %153 : vector<16x128xf32>
    %c3_19 = arith.constant 3 : index
    %c0_20 = arith.constant 0 : index
    %c0_21 = arith.constant 0 : index
    %155 = vector.load %arg1[%c3_19, %c0_20, %c0_21] : memref<8x16x128xf32, #tpu.memory_space<vmem>>, vector<1x16x128xf32>
    %156 = vector.shape_cast %155 : vector<1x16x128xf32> to vector<16x128xf32>
    %157 = arith.addf %110, %156 : vector<16x128xf32>
    %158 = vector.broadcast %0 : f32 to vector<16x128xf32>
    %159 = arith.mulf %158, %156 : vector<16x128xf32>
    %160 = vector.broadcast %6 : f32 to vector<16x128xf32>
    %161 = arith.addf %159, %160 : vector<16x128xf32>
    %162 = vector.broadcast %3 : f32 to vector<16x128xf32>
    %163 = arith.mulf %162, %154 : vector<16x128xf32>
    %164 = arith.addf %161, %163 : vector<16x128xf32>
    %165 = vector.broadcast %9 : f32 to vector<16x128xf32>
    %166 = arith.addf %164, %165 : vector<16x128xf32>
    %167 = arith.negf %166 : vector<16x128xf32>
    %168 = math.exp %167 : vector<16x128xf32>
    %cst_22 = arith.constant 1.000000e+00 : f32
    %169 = vector.broadcast %cst_22 : f32 to vector<16x128xf32>
    %170 = arith.addf %169, %168 : vector<16x128xf32>
    %171 = arith.divf %169, %170 : vector<16x128xf32>
    %172 = vector.broadcast %1 : f32 to vector<16x128xf32>
    %173 = arith.mulf %172, %156 : vector<16x128xf32>
    %174 = vector.broadcast %7 : f32 to vector<16x128xf32>
    %175 = arith.addf %173, %174 : vector<16x128xf32>
    %176 = vector.broadcast %4 : f32 to vector<16x128xf32>
    %177 = arith.mulf %176, %154 : vector<16x128xf32>
    %178 = arith.addf %175, %177 : vector<16x128xf32>
    %179 = vector.broadcast %10 : f32 to vector<16x128xf32>
    %180 = arith.addf %178, %179 : vector<16x128xf32>
    %181 = arith.negf %180 : vector<16x128xf32>
    %182 = math.exp %181 : vector<16x128xf32>
    %cst_23 = arith.constant 1.000000e+00 : f32
    %183 = vector.broadcast %cst_23 : f32 to vector<16x128xf32>
    %184 = arith.addf %183, %182 : vector<16x128xf32>
    %185 = arith.divf %183, %184 : vector<16x128xf32>
    %186 = vector.broadcast %2 : f32 to vector<16x128xf32>
    %187 = arith.mulf %186, %156 : vector<16x128xf32>
    %188 = vector.broadcast %8 : f32 to vector<16x128xf32>
    %189 = arith.addf %187, %188 : vector<16x128xf32>
    %190 = vector.broadcast %5 : f32 to vector<16x128xf32>
    %191 = arith.mulf %190, %154 : vector<16x128xf32>
    %192 = vector.broadcast %11 : f32 to vector<16x128xf32>
    %193 = arith.addf %191, %192 : vector<16x128xf32>
    %194 = arith.mulf %171, %193 : vector<16x128xf32>
    %195 = arith.addf %189, %194 : vector<16x128xf32>
    %196 = math.tanh %195 : vector<16x128xf32>
    %cst_24 = arith.constant 1.000000e+00 : f32
    %197 = vector.broadcast %cst_24 : f32 to vector<16x128xf32>
    %198 = arith.subf %197, %185 : vector<16x128xf32>
    %199 = arith.mulf %198, %196 : vector<16x128xf32>
    %200 = arith.mulf %185, %154 : vector<16x128xf32>
    %201 = arith.addf %199, %200 : vector<16x128xf32>
    %c4_25 = arith.constant 4 : index
    %c0_26 = arith.constant 0 : index
    %c0_27 = arith.constant 0 : index
    %202 = vector.load %arg1[%c4_25, %c0_26, %c0_27] : memref<8x16x128xf32, #tpu.memory_space<vmem>>, vector<1x16x128xf32>
    %203 = vector.shape_cast %202 : vector<1x16x128xf32> to vector<16x128xf32>
    %204 = arith.addf %157, %203 : vector<16x128xf32>
    %205 = vector.broadcast %0 : f32 to vector<16x128xf32>
    %206 = arith.mulf %205, %203 : vector<16x128xf32>
    %207 = vector.broadcast %6 : f32 to vector<16x128xf32>
    %208 = arith.addf %206, %207 : vector<16x128xf32>
    %209 = vector.broadcast %3 : f32 to vector<16x128xf32>
    %210 = arith.mulf %209, %201 : vector<16x128xf32>
    %211 = arith.addf %208, %210 : vector<16x128xf32>
    %212 = vector.broadcast %9 : f32 to vector<16x128xf32>
    %213 = arith.addf %211, %212 : vector<16x128xf32>
    %214 = arith.negf %213 : vector<16x128xf32>
    %215 = math.exp %214 : vector<16x128xf32>
    %cst_28 = arith.constant 1.000000e+00 : f32
    %216 = vector.broadcast %cst_28 : f32 to vector<16x128xf32>
    %217 = arith.addf %216, %215 : vector<16x128xf32>
    %218 = arith.divf %216, %217 : vector<16x128xf32>
    %219 = vector.broadcast %1 : f32 to vector<16x128xf32>
    %220 = arith.mulf %219, %203 : vector<16x128xf32>
    %221 = vector.broadcast %7 : f32 to vector<16x128xf32>
    %222 = arith.addf %220, %221 : vector<16x128xf32>
    %223 = vector.broadcast %4 : f32 to vector<16x128xf32>
    %224 = arith.mulf %223, %201 : vector<16x128xf32>
    %225 = arith.addf %222, %224 : vector<16x128xf32>
    %226 = vector.broadcast %10 : f32 to vector<16x128xf32>
    %227 = arith.addf %225, %226 : vector<16x128xf32>
    %228 = arith.negf %227 : vector<16x128xf32>
    %229 = math.exp %228 : vector<16x128xf32>
    %cst_29 = arith.constant 1.000000e+00 : f32
    %230 = vector.broadcast %cst_29 : f32 to vector<16x128xf32>
    %231 = arith.addf %230, %229 : vector<16x128xf32>
    %232 = arith.divf %230, %231 : vector<16x128xf32>
    %233 = vector.broadcast %2 : f32 to vector<16x128xf32>
    %234 = arith.mulf %233, %203 : vector<16x128xf32>
    %235 = vector.broadcast %8 : f32 to vector<16x128xf32>
    %236 = arith.addf %234, %235 : vector<16x128xf32>
    %237 = vector.broadcast %5 : f32 to vector<16x128xf32>
    %238 = arith.mulf %237, %201 : vector<16x128xf32>
    %239 = vector.broadcast %11 : f32 to vector<16x128xf32>
    %240 = arith.addf %238, %239 : vector<16x128xf32>
    %241 = arith.mulf %218, %240 : vector<16x128xf32>
    %242 = arith.addf %236, %241 : vector<16x128xf32>
    %243 = math.tanh %242 : vector<16x128xf32>
    %cst_30 = arith.constant 1.000000e+00 : f32
    %244 = vector.broadcast %cst_30 : f32 to vector<16x128xf32>
    %245 = arith.subf %244, %232 : vector<16x128xf32>
    %246 = arith.mulf %245, %243 : vector<16x128xf32>
    %247 = arith.mulf %232, %201 : vector<16x128xf32>
    %248 = arith.addf %246, %247 : vector<16x128xf32>
    %c5_31 = arith.constant 5 : index
    %c0_32 = arith.constant 0 : index
    %c0_33 = arith.constant 0 : index
    %249 = vector.load %arg1[%c5_31, %c0_32, %c0_33] : memref<8x16x128xf32, #tpu.memory_space<vmem>>, vector<1x16x128xf32>
    %250 = vector.shape_cast %249 : vector<1x16x128xf32> to vector<16x128xf32>
    %251 = arith.addf %204, %250 : vector<16x128xf32>
    %252 = vector.broadcast %0 : f32 to vector<16x128xf32>
    %253 = arith.mulf %252, %250 : vector<16x128xf32>
    %254 = vector.broadcast %6 : f32 to vector<16x128xf32>
    %255 = arith.addf %253, %254 : vector<16x128xf32>
    %256 = vector.broadcast %3 : f32 to vector<16x128xf32>
    %257 = arith.mulf %256, %248 : vector<16x128xf32>
    %258 = arith.addf %255, %257 : vector<16x128xf32>
    %259 = vector.broadcast %9 : f32 to vector<16x128xf32>
    %260 = arith.addf %258, %259 : vector<16x128xf32>
    %261 = arith.negf %260 : vector<16x128xf32>
    %262 = math.exp %261 : vector<16x128xf32>
    %cst_34 = arith.constant 1.000000e+00 : f32
    %263 = vector.broadcast %cst_34 : f32 to vector<16x128xf32>
    %264 = arith.addf %263, %262 : vector<16x128xf32>
    %265 = arith.divf %263, %264 : vector<16x128xf32>
    %266 = vector.broadcast %1 : f32 to vector<16x128xf32>
    %267 = arith.mulf %266, %250 : vector<16x128xf32>
    %268 = vector.broadcast %7 : f32 to vector<16x128xf32>
    %269 = arith.addf %267, %268 : vector<16x128xf32>
    %270 = vector.broadcast %4 : f32 to vector<16x128xf32>
    %271 = arith.mulf %270, %248 : vector<16x128xf32>
    %272 = arith.addf %269, %271 : vector<16x128xf32>
    %273 = vector.broadcast %10 : f32 to vector<16x128xf32>
    %274 = arith.addf %272, %273 : vector<16x128xf32>
    %275 = arith.negf %274 : vector<16x128xf32>
    %276 = math.exp %275 : vector<16x128xf32>
    %cst_35 = arith.constant 1.000000e+00 : f32
    %277 = vector.broadcast %cst_35 : f32 to vector<16x128xf32>
    %278 = arith.addf %277, %276 : vector<16x128xf32>
    %279 = arith.divf %277, %278 : vector<16x128xf32>
    %280 = vector.broadcast %2 : f32 to vector<16x128xf32>
    %281 = arith.mulf %280, %250 : vector<16x128xf32>
    %282 = vector.broadcast %8 : f32 to vector<16x128xf32>
    %283 = arith.addf %281, %282 : vector<16x128xf32>
    %284 = vector.broadcast %5 : f32 to vector<16x128xf32>
    %285 = arith.mulf %284, %248 : vector<16x128xf32>
    %286 = vector.broadcast %11 : f32 to vector<16x128xf32>
    %287 = arith.addf %285, %286 : vector<16x128xf32>
    %288 = arith.mulf %265, %287 : vector<16x128xf32>
    %289 = arith.addf %283, %288 : vector<16x128xf32>
    %290 = math.tanh %289 : vector<16x128xf32>
    %cst_36 = arith.constant 1.000000e+00 : f32
    %291 = vector.broadcast %cst_36 : f32 to vector<16x128xf32>
    %292 = arith.subf %291, %279 : vector<16x128xf32>
    %293 = arith.mulf %292, %290 : vector<16x128xf32>
    %294 = arith.mulf %279, %248 : vector<16x128xf32>
    %295 = arith.addf %293, %294 : vector<16x128xf32>
    %c6_37 = arith.constant 6 : index
    %c0_38 = arith.constant 0 : index
    %c0_39 = arith.constant 0 : index
    %296 = vector.load %arg1[%c6_37, %c0_38, %c0_39] : memref<8x16x128xf32, #tpu.memory_space<vmem>>, vector<1x16x128xf32>
    %297 = vector.shape_cast %296 : vector<1x16x128xf32> to vector<16x128xf32>
    %298 = arith.addf %251, %297 : vector<16x128xf32>
    %299 = vector.broadcast %0 : f32 to vector<16x128xf32>
    %300 = arith.mulf %299, %297 : vector<16x128xf32>
    %301 = vector.broadcast %6 : f32 to vector<16x128xf32>
    %302 = arith.addf %300, %301 : vector<16x128xf32>
    %303 = vector.broadcast %3 : f32 to vector<16x128xf32>
    %304 = arith.mulf %303, %295 : vector<16x128xf32>
    %305 = arith.addf %302, %304 : vector<16x128xf32>
    %306 = vector.broadcast %9 : f32 to vector<16x128xf32>
    %307 = arith.addf %305, %306 : vector<16x128xf32>
    %308 = arith.negf %307 : vector<16x128xf32>
    %309 = math.exp %308 : vector<16x128xf32>
    %cst_40 = arith.constant 1.000000e+00 : f32
    %310 = vector.broadcast %cst_40 : f32 to vector<16x128xf32>
    %311 = arith.addf %310, %309 : vector<16x128xf32>
    %312 = arith.divf %310, %311 : vector<16x128xf32>
    %313 = vector.broadcast %1 : f32 to vector<16x128xf32>
    %314 = arith.mulf %313, %297 : vector<16x128xf32>
    %315 = vector.broadcast %7 : f32 to vector<16x128xf32>
    %316 = arith.addf %314, %315 : vector<16x128xf32>
    %317 = vector.broadcast %4 : f32 to vector<16x128xf32>
    %318 = arith.mulf %317, %295 : vector<16x128xf32>
    %319 = arith.addf %316, %318 : vector<16x128xf32>
    %320 = vector.broadcast %10 : f32 to vector<16x128xf32>
    %321 = arith.addf %319, %320 : vector<16x128xf32>
    %322 = arith.negf %321 : vector<16x128xf32>
    %323 = math.exp %322 : vector<16x128xf32>
    %cst_41 = arith.constant 1.000000e+00 : f32
    %324 = vector.broadcast %cst_41 : f32 to vector<16x128xf32>
    %325 = arith.addf %324, %323 : vector<16x128xf32>
    %326 = arith.divf %324, %325 : vector<16x128xf32>
    %327 = vector.broadcast %2 : f32 to vector<16x128xf32>
    %328 = arith.mulf %327, %297 : vector<16x128xf32>
    %329 = vector.broadcast %8 : f32 to vector<16x128xf32>
    %330 = arith.addf %328, %329 : vector<16x128xf32>
    %331 = vector.broadcast %5 : f32 to vector<16x128xf32>
    %332 = arith.mulf %331, %295 : vector<16x128xf32>
    %333 = vector.broadcast %11 : f32 to vector<16x128xf32>
    %334 = arith.addf %332, %333 : vector<16x128xf32>
    %335 = arith.mulf %312, %334 : vector<16x128xf32>
    %336 = arith.addf %330, %335 : vector<16x128xf32>
    %337 = math.tanh %336 : vector<16x128xf32>
    %cst_42 = arith.constant 1.000000e+00 : f32
    %338 = vector.broadcast %cst_42 : f32 to vector<16x128xf32>
    %339 = arith.subf %338, %326 : vector<16x128xf32>
    %340 = arith.mulf %339, %337 : vector<16x128xf32>
    %341 = arith.mulf %326, %295 : vector<16x128xf32>
    %342 = arith.addf %340, %341 : vector<16x128xf32>
    %c7_43 = arith.constant 7 : index
    %c0_44 = arith.constant 0 : index
    %c0_45 = arith.constant 0 : index
    %343 = vector.load %arg1[%c7_43, %c0_44, %c0_45] : memref<8x16x128xf32, #tpu.memory_space<vmem>>, vector<1x16x128xf32>
    %344 = vector.shape_cast %343 : vector<1x16x128xf32> to vector<16x128xf32>
    %345 = arith.addf %298, %344 : vector<16x128xf32>
    %346 = vector.broadcast %0 : f32 to vector<16x128xf32>
    %347 = arith.mulf %346, %344 : vector<16x128xf32>
    %348 = vector.broadcast %6 : f32 to vector<16x128xf32>
    %349 = arith.addf %347, %348 : vector<16x128xf32>
    %350 = vector.broadcast %3 : f32 to vector<16x128xf32>
    %351 = arith.mulf %350, %342 : vector<16x128xf32>
    %352 = arith.addf %349, %351 : vector<16x128xf32>
    %353 = vector.broadcast %9 : f32 to vector<16x128xf32>
    %354 = arith.addf %352, %353 : vector<16x128xf32>
    %355 = arith.negf %354 : vector<16x128xf32>
    %356 = math.exp %355 : vector<16x128xf32>
    %cst_46 = arith.constant 1.000000e+00 : f32
    %357 = vector.broadcast %cst_46 : f32 to vector<16x128xf32>
    %358 = arith.addf %357, %356 : vector<16x128xf32>
    %359 = arith.divf %357, %358 : vector<16x128xf32>
    %360 = vector.broadcast %1 : f32 to vector<16x128xf32>
    %361 = arith.mulf %360, %344 : vector<16x128xf32>
    %362 = vector.broadcast %7 : f32 to vector<16x128xf32>
    %363 = arith.addf %361, %362 : vector<16x128xf32>
    %364 = vector.broadcast %4 : f32 to vector<16x128xf32>
    %365 = arith.mulf %364, %342 : vector<16x128xf32>
    %366 = arith.addf %363, %365 : vector<16x128xf32>
    %367 = vector.broadcast %10 : f32 to vector<16x128xf32>
    %368 = arith.addf %366, %367 : vector<16x128xf32>
    %369 = arith.negf %368 : vector<16x128xf32>
    %370 = math.exp %369 : vector<16x128xf32>
    %cst_47 = arith.constant 1.000000e+00 : f32
    %371 = vector.broadcast %cst_47 : f32 to vector<16x128xf32>
    %372 = arith.addf %371, %370 : vector<16x128xf32>
    %373 = arith.divf %371, %372 : vector<16x128xf32>
    %374 = vector.broadcast %2 : f32 to vector<16x128xf32>
    %375 = arith.mulf %374, %344 : vector<16x128xf32>
    %376 = vector.broadcast %8 : f32 to vector<16x128xf32>
    %377 = arith.addf %375, %376 : vector<16x128xf32>
    %378 = vector.broadcast %5 : f32 to vector<16x128xf32>
    %379 = arith.mulf %378, %342 : vector<16x128xf32>
    %380 = vector.broadcast %11 : f32 to vector<16x128xf32>
    %381 = arith.addf %379, %380 : vector<16x128xf32>
    %382 = arith.mulf %359, %381 : vector<16x128xf32>
    %383 = arith.addf %377, %382 : vector<16x128xf32>
    %384 = math.tanh %383 : vector<16x128xf32>
    %cst_48 = arith.constant 1.000000e+00 : f32
    %385 = vector.broadcast %cst_48 : f32 to vector<16x128xf32>
    %386 = arith.subf %385, %373 : vector<16x128xf32>
    %387 = arith.mulf %386, %384 : vector<16x128xf32>
    %388 = arith.mulf %373, %342 : vector<16x128xf32>
    %389 = arith.addf %387, %388 : vector<16x128xf32>
    %c0_49 = arith.constant 0 : index
    %c0_50 = arith.constant 0 : index
    %390 = vector.load %arg3[%c0_49, %c0_50] : memref<16x128xf32, #tpu.memory_space<vmem>>, vector<16x128xf32>
    tpu.vector_store %arg3[%c0_49, %c0_50], %389 {strides = array<i32>} : memref<16x128xf32, #tpu.memory_space<vmem>>, vector<16x128xf32>,
    %cst_51 = arith.constant 1.250000e-01 : f32
    %391 = vector.broadcast %cst_51 : f32 to vector<16x128xf32>
    %392 = arith.mulf %345, %391 : vector<16x128xf32>
    %c0_52 = arith.constant 0 : index
    %c0_53 = arith.constant 0 : index
    %393 = vector.load %arg4[%c0_52, %c0_53] : memref<16x128xf32, #tpu.memory_space<vmem>>, vector<16x128xf32>
    tpu.vector_store %arg4[%c0_52, %c0_53], %392 {strides = array<i32>} : memref<16x128xf32, #tpu.memory_space<vmem>>, vector<16x128xf32>,
    return
  }
  func.func @transform_0(%arg0: i32) -> (i32, i32, i32) {
    %c0_i32 = arith.constant 0 : i32
    %c0_i32_0 = arith.constant 0 : i32
    %c0_i32_1 = arith.constant 0 : i32
    return %c0_i32, %arg0, %c0_i32_0 : i32, i32, i32
  }
  func.func @transform_1(%arg0: i32) -> i32 {
    %c0_i32 = arith.constant 0 : i32
    %c0_i32_0 = arith.constant 0 : i32
    return %c0_i32 : i32
  }
  func.func @transform_2(%arg0: i32) -> (i32, i32) {
    %c0_i32 = arith.constant 0 : i32
    %c0_i32_0 = arith.constant 0 : i32
    return %arg0, %c0_i32 : i32, i32
  }
  func.func @transform_3(%arg0: i32) -> (i32, i32) {
    %c0_i32 = arith.constant 0 : i32
    %c0_i32_0 = arith.constant 0 : i32
    return %arg0, %c0_i32 : i32, i32
  }
}

</mosaic_0001>

<llo_original>
// kernel: tpu_custom_call.1
$region0: #{tpu_custom_call.1}
  #allocation0 [shape = 'u32[]', space=smem, size = 0x4, offset = 0x4, fixed_abs, tag = 'smem constant byte address 0x4 - core index']
  #allocation1 [shape = 'u32[72,128]{1,0:T(1,128)}', space=vmem, size = 0x9000, scoped, tag = 'internal scratch']
  %s0 = inlined_call_operand.hbm [shape: f32[8,16,128], index: 0, kind: input, shape index: {}]
  %s1 = inlined_call_operand.hbm [shape: f32[12], index: 1, kind: input, shape index: {}]
  %s2 = inlined_call_operand.hbm [shape: f32[16,128], index: 2, kind: output, shape index: {0}]
  %s3 = inlined_call_operand.hbm [shape: f32[16,128], index: 3, kind: output, shape index: {1}]
  %4 = xla_tuple %s2, %s3
  %s5 = sld [smem:[#allocation0]]
  $region34: #{tpu_custom_call.1} parent=0
    _
  %s7 = ssub.s32 1, %s5
  %s8 = scalar_select 0, %s7, %s5
  $region1: #{tpu_custom_call.1} parent=0
    #allocation2 [shape = 'u8[65536]{0}', space=vmem, size = 0x10000, scoped, tag = 'input window, operand 0, single buffered']
    #allocation3 [shape = 's32[1]{0}', space=sflag, size = 0x4, scoped, tag = 'scoped memory for tpu_custom_call.1']
    #allocation4 [shape = 's32[1]{0}', space=sflag, size = 0x4, scoped, tag = 'scoped memory for tpu_custom_call.1']
    #allocation5 [shape = 's32[1]{0}', space=sflag, size = 0x4, scoped, tag = 'scoped memory for tpu_custom_call.1']
    #allocation6 [shape = 'u8[512]{0}', space=smem, size = 0x200, scoped, tag = 'input window, operand 1, single buffered']
    #allocation7 [shape = 'u8[8192]{0}', space=vmem, size = 0x2000, scoped, tag = 'output window, operand 0, single buffered']
    #allocation8 [shape = 'u8[8192]{0}', space=vmem, size = 0x2000, scoped, tag = 'output window, operand 1, single buffered']
    #allocation9 [shape = 's32[1]{0}', space=sflag, size = 0x4, scoped, tag = 'scoped memory for tpu_custom_call.1']
    %9 = vsyncpa [#allocation3], 0
    %10 = vsyncpa [#allocation5], 0
    %11 = vsyncpa [#allocation4], 0
    %12 = vsyncpa [#allocation9], 0
    // Predicated region
    $region2: #{tpu_custom_call.1} parent=1 // pred_check
      _
    $region3: #{tpu_custom_call.1} parent=1 // pred_check_branch
      %14 = sbr.rel (0) target = $region5
    $region4: #{tpu_custom_call.1} parent=1 // pred_region
      %16 = vsyncadd [#allocation3], 0
      %s17 = sshll.u32 %s0, 4
      %s18 = int_to_ptr.hbm [resolvable:$true] %s17
      %s19 = sshll.u32 [#allocation2], 4
      %s20 = int_to_ptr.vmem [resolvable:$true] %s19
      %25 = dma.hbm_to_vmem [thread:$0]  %s18, 2048, %s20, [#allocation3], 128, 128, 8
    $region5: #{tpu_custom_call.1} parent=1 // pred_fallthru
      _
    // Predicated region
    $region6: #{tpu_custom_call.1} parent=1 // pred_check
      _
    $region7: #{tpu_custom_call.1} parent=1 // pred_check_branch
      %27 = sbr.rel (0) target = $region9
    $region8: #{tpu_custom_call.1} parent=1 // pred_region
      %29 = vsyncadd [#allocation5], 0
      %s31 = sshll.u32 %s1, 4
      %s32 = int_to_ptr.hbm [resolvable:$true] %s31
      %34 = dma.hbm_to_smem %s32, 16, [#allocation6], [#allocation5]
    $region9: #{tpu_custom_call.1} parent=1 // pred_fallthru
      _
    // Predicated region
    $region10: #{tpu_custom_call.1} parent=1 // pred_check
      _
    $region11: #{tpu_custom_call.1} parent=1 // pred_check_branch
      %36 = sbr.rel (0) target = $region13
    $region12: #{tpu_custom_call.1} parent=1 // pred_region
      %38 = dma.done [#allocation3], 2048
    $region13: #{tpu_custom_call.1} parent=1 // pred_fallthru
      _
    // Predicated region
    $region14: #{tpu_custom_call.1} parent=1 // pred_check
      _
    $region15: #{tpu_custom_call.1} parent=1 // pred_check_branch
      %40 = sbr.rel (0) target = $region17
    $region16: #{tpu_custom_call.1} parent=1 // pred_region
      %42 = dma.done [#allocation5], 16
    $region17: #{tpu_custom_call.1} parent=1 // pred_fallthru
      _
    %43 = sfence
    %s44 = sld [smem:[#allocation6]]
    %s45 = sld [smem:[#allocation6 + $0x1]]
    %s46 = sld [smem:[#allocation6 + $0x2]]
    %s47 = sld [smem:[#allocation6 + $0x3]]
    %s48 = sld [smem:[#allocation6 + $0x4]]
    %s49 = sld [smem:[#allocation6 + $0x5]]
    %s50 = sld [smem:[#allocation6 + $0x6]]
    %s51 = sld [smem:[#allocation6 + $0x7]]
    %s52 = sld [smem:[#allocation6 + $0x8]]
    %s53 = sld [smem:[#allocation6 + $0x9]]
    %s54 = sld [smem:[#allocation6 + $0xa]]
    %s55 = sld [smem:[#allocation6 + $0xb]]
    %v56 = vld [vmem:[#allocation2] sm:$0xff]
    %v57 = vld [vmem:[#allocation2 + $0x8] sm:$0xff]
    %v58 = vadd.f32 %v56, 0.0
    %v59 = vadd.f32 %v57, 0.0
    %v60 = vstv %s44
    %v61 = vmul.f32 %v60, %v56
    %v62 = vmul.f32 %v60, %v57
    %v63 = vstv %s50
    %v64 = vadd.f32 %v61, %v63
    %v65 = vadd.f32 %v62, %v63
    %v66 = vstv %s47
    %v67 = vmul.f32 %v66, 0.0
    %v68 = vadd.f32 %v64, %v67
    %v69 = vadd.f32 %v65, %v67
    %v70 = vstv %s53
    %v71 = vadd.f32 %v68, %v70
    %v72 = vadd.f32 %v69, %v70
    %v73 = vxor.u32 %v71, 2147483648
    %v74 = vxor.u32 %v72, 2147483648
    %v75 = vmul.f32 %v73, 1.442695
    %v76 = vpow.pop %v75
    %v77 = vmul.f32 %v74, 1.442695
    %v78 = vpow.pop %v77
    %v79 = vadd.f32 %v76, 1.0
    %v80 = vadd.f32 %v78, 1.0
    %v81 = vrcp.pop %v79
    %v82 = vmul.f32 %v79, %v81
    %v83 = vsub.f32 1.0, %v82
    %v84 = vmul.f32 %v81, %v83
    %v85 = vadd.f32 %v81, %v84
    %vm86 = vweird.f32 %v79
    %vm87 = vweird.f32 %v81
    %vm88 = vmor %vm86, %vm87
    %v89 = vsel %vm88, %v81, %v85
    %v90 = vand.u32 2147483647, %v79
    %vm91 = vcmp.eq.f32.partialorder %v90, 8.507059e+37
    %v92 = vand.u32 %v79, 2147483648
    %v93 = vor.u32 1.1754944e-38, %v92
    %v94 = vsel %vm91, %v93, %v89
    %v95 = vmul.f32 1.0, %v94
    %v96 = vrcp.pop %v80
    %v97 = vmul.f32 %v80, %v96
    %v98 = vsub.f32 1.0, %v97
    %v99 = vmul.f32 %v96, %v98
    %v100 = vadd.f32 %v96, %v99
    %vm101 = vweird.f32 %v80
    %vm102 = vweird.f32 %v96
    %vm103 = vmor %vm101, %vm102
    %v104 = vsel %vm103, %v96, %v100
    %v105 = vand.u32 2147483647, %v80
    %vm106 = vcmp.eq.f32.partialorder %v105, 8.507059e+37
    %v107 = vand.u32 %v80, 2147483648
    %v108 = vor.u32 1.1754944e-38, %v107
    %v109 = vsel %vm106, %v108, %v104
    %v110 = vmul.f32 1.0, %v109
    %v111 = vstv %s45
    %v112 = vmul.f32 %v111, %v56
    %v113 = vmul.f32 %v111, %v57
    %v114 = vstv %s51
    %v115 = vadd.f32 %v112, %v114
    %v116 = vadd.f32 %v113, %v114
    %v117 = vstv %s48
    %v118 = vmul.f32 %v117, 0.0
    %v119 = vadd.f32 %v115, %v118
    %v120 = vadd.f32 %v116, %v118
    %v121 = vstv %s54
    %v122 = vadd.f32 %v119, %v121
    %v123 = vadd.f32 %v120, %v121
    %v124 = vxor.u32 %v122, 2147483648
    %v125 = vxor.u32 %v123, 2147483648
    %v126 = vmul.f32 %v124, 1.442695
    %v127 = vpow.pop %v126
    %v128 = vmul.f32 %v125, 1.442695
    %v129 = vpow.pop %v128
    %v130 = vadd.f32 %v127, 1.0
    %v131 = vadd.f32 %v129, 1.0
    %v132 = vrcp.pop %v130
    %v133 = vmul.f32 %v130, %v132
    %v134 = vsub.f32 1.0, %v133
    %v135 = vmul.f32 %v132, %v134
    %v136 = vadd.f32 %v132, %v135
    %vm137 = vweird.f32 %v130
    %vm138 = vweird.f32 %v132
    %vm139 = vmor %vm137, %vm138
    %v140 = vsel %vm139, %v132, %v136
    %v141 = vand.u32 2147483647, %v130
    %vm142 = vcmp.eq.f32.partialorder %v141, 8.507059e+37
    %v143 = vand.u32 %v130, 2147483648
    %v144 = vor.u32 1.1754944e-38, %v143
    %v145 = vsel %vm142, %v144, %v140
    %v146 = vmul.f32 1.0, %v145
    %v147 = vrcp.pop %v131
    %v148 = vmul.f32 %v131, %v147
    %v149 = vsub.f32 1.0, %v148
    %v150 = vmul.f32 %v147, %v149
    %v151 = vadd.f32 %v147, %v150
    %vm152 = vweird.f32 %v131
    %vm153 = vweird.f32 %v147
    %vm154 = vmor %vm152, %vm153
    %v155 = vsel %vm154, %v147, %v151
    %v156 = vand.u32 2147483647, %v131
    %vm157 = vcmp.eq.f32.partialorder %v156, 8.507059e+37
    %v158 = vand.u32 %v131, 2147483648
    %v159 = vor.u32 1.1754944e-38, %v158
    %v160 = vsel %vm157, %v159, %v155
    %v161 = vmul.f32 1.0, %v160
    %v162 = vstv %s46
    %v163 = vmul.f32 %v162, %v56
    %v164 = vmul.f32 %v162, %v57
    %v165 = vstv %s52
    %v166 = vadd.f32 %v163, %v165
    %v167 = vadd.f32 %v164, %v165
    %v168 = vstv %s49
    %v169 = vmul.f32 %v168, 0.0
    %v170 = vstv %s55
    %v171 = vadd.f32 %v169, %v170
    %v172 = vmul.f32 %v95, %v171
    %v173 = vmul.f32 %v110, %v171
    %v174 = vadd.f32 %v166, %v172
    %v175 = vadd.f32 %v167, %v173
    %v176 = vtanh.pop %v174
    %v177 = vtanh.pop %v175
    %v178 = vsub.f32 1.0, %v146
    %v179 = vsub.f32 1.0, %v161
    %v180 = vmul.f32 %v178, %v176
    %v181 = vmul.f32 %v179, %v177
    %v182 = vmul.f32 %v146, 0.0
    %v183 = vmul.f32 %v161, 0.0
    %v184 = vadd.f32 %v180, %v182
    %v185 = vadd.f32 %v181, %v183
    %s186 = scalar_lea.vmem [#allocation2], 16
    %v187 = vld [vmem:[%s186] sm:$0xff]
    %v188 = vld [vmem:[%s186 + $0x8] sm:$0xff]
    %v189 = vadd.f32 %v58, %v187
    %v190 = vadd.f32 %v59, %v188
    %v191 = vmul.f32 %v60, %v187
    %v192 = vmul.f32 %v60, %v188
    %v193 = vadd.f32 %v191, %v63
    %v194 = vadd.f32 %v192, %v63
    %v195 = vmul.f32 %v66, %v184
    %v196 = vmul.f32 %v66, %v185
    %v197 = vadd.f32 %v193, %v195
    %v198 = vadd.f32 %v194, %v196
    %v199 = vadd.f32 %v197, %v70
    %v200 = vadd.f32 %v198, %v70
    %v201 = vxor.u32 %v199, 2147483648
    %v202 = vxor.u32 %v200, 2147483648
    %v203 = vmul.f32 %v201, 1.442695
    %v204 = vpow.pop %v203
    %v205 = vmul.f32 %v202, 1.442695
    %v206 = vpow.pop %v205
    %v207 = vadd.f32 %v204, 1.0
    %v208 = vadd.f32 %v206, 1.0
    %v209 = vrcp.pop %v207
    %v210 = vmul.f32 %v207, %v209
    %v211 = vsub.f32 1.0, %v210
    %v212 = vmul.f32 %v209, %v211
    %v213 = vadd.f32 %v209, %v212
    %vm214 = vweird.f32 %v207
    %vm215 = vweird.f32 %v209
    %vm216 = vmor %vm214, %vm215
    %v217 = vsel %vm216, %v209, %v213
    %v218 = vand.u32 2147483647, %v207
    %vm219 = vcmp.eq.f32.partialorder %v218, 8.507059e+37
    %v220 = vand.u32 %v207, 2147483648
    %v221 = vor.u32 1.1754944e-38, %v220
    %v222 = vsel %vm219, %v221, %v217
    %v223 = vmul.f32 1.0, %v222
    %v224 = vrcp.pop %v208
    %v225 = vmul.f32 %v208, %v224
    %v226 = vsub.f32 1.0, %v225
    %v227 = vmul.f32 %v224, %v226
    %v228 = vadd.f32 %v224, %v227
    %vm229 = vweird.f32 %v208
    %vm230 = vweird.f32 %v224
    %vm231 = vmor %vm229, %vm230
    %v232 = vsel %vm231, %v224, %v228
    %v233 = vand.u32 2147483647, %v208
    %vm234 = vcmp.eq.f32.partialorder %v233, 8.507059e+37
    %v235 = vand.u32 %v208, 2147483648
    %v236 = vor.u32 1.1754944e-38, %v235
    %v237 = vsel %vm234, %v236, %v232
    %v238 = vmul.f32 1.0, %v237
    %v239 = vmul.f32 %v111, %v187
    %v240 = vmul.f32 %v111, %v188
    %v241 = vadd.f32 %v239, %v114
    %v242 = vadd.f32 %v240, %v114
    %v243 = vmul.f32 %v117, %v184
    %v244 = vmul.f32 %v117, %v185
    %v245 = vadd.f32 %v241, %v243
    %v246 = vadd.f32 %v242, %v244
    %v247 = vadd.f32 %v245, %v121
    %v248 = vadd.f32 %v246, %v121
    %v249 = vxor.u32 %v247, 2147483648
    %v250 = vxor.u32 %v248, 2147483648
    %v251 = vmul.f32 %v249, 1.442695
    %v252 = vpow.pop %v251
    %v253 = vmul.f32 %v250, 1.442695
    %v254 = vpow.pop %v253
    %v255 = vadd.f32 %v252, 1.0
    %v256 = vadd.f32 %v254, 1.0
    %v257 = vrcp.pop %v255
    %v258 = vmul.f32 %v255, %v257
    %v259 = vsub.f32 1.0, %v258
    %v260 = vmul.f32 %v257, %v259
    %v261 = vadd.f32 %v257, %v260
    %vm262 = vweird.f32 %v255
    %vm263 = vweird.f32 %v257
    %vm264 = vmor %vm262, %vm263
    %v265 = vsel %vm264, %v257, %v261
    %v266 = vand.u32 2147483647, %v255
    %vm267 = vcmp.eq.f32.partialorder %v266, 8.507059e+37
    %v268 = vand.u32 %v255, 2147483648
    %v269 = vor.u32 1.1754944e-38, %v268
    %v270 = vsel %vm267, %v269, %v265
    %v271 = vmul.f32 1.0, %v270
    %v272 = vrcp.pop %v256
    %v273 = vmul.f32 %v256, %v272
    %v274 = vsub.f32 1.0, %v273
    %v275 = vmul.f32 %v272, %v274
    %v276 = vadd.f32 %v272, %v275
    %vm277 = vweird.f32 %v256
    %vm278 = vweird.f32 %v272
    %vm279 = vmor %vm277, %vm278
    %v280 = vsel %vm279, %v272, %v276
    %v281 = vand.u32 2147483647, %v256
    %vm282 = vcmp.eq.f32.partialorder %v281, 8.507059e+37
    %v283 = vand.u32 %v256, 2147483648
    %v284 = vor.u32 1.1754944e-38, %v283
    %v285 = vsel %vm282, %v284, %v280
    %v286 = vmul.f32 1.0, %v285
    %v287 = vmul.f32 %v162, %v187
    %v288 = vmul.f32 %v162, %v188
    %v289 = vadd.f32 %v287, %v165
    %v290 = vadd.f32 %v288, %v165
    %v291 = vmul.f32 %v168, %v184
    %v292 = vmul.f32 %v168, %v185
    %v293 = vadd.f32 %v291, %v170
    %v294 = vadd.f32 %v292, %v170
    %v295 = vmul.f32 %v223, %v293
    %v296 = vmul.f32 %v238, %v294
    %v297 = vadd.f32 %v289, %v295
    %v298 = vadd.f32 %v290, %v296
    %v299 = vtanh.pop %v297
    %v300 = vtanh.pop %v298
    %v301 = vsub.f32 1.0, %v271
    %v302 = vsub.f32 1.0, %v286
    %v303 = vmul.f32 %v301, %v299
    %v304 = vmul.f32 %v302, %v300
    %v305 = vmul.f32 %v271, %v184
    %v306 = vmul.f32 %v286, %v185
    %v307 = vadd.f32 %v303, %v305
    %v308 = vadd.f32 %v304, %v306
    %s309 = scalar_lea.vmem [#allocation2], 32
    %v310 = vld [vmem:[%s309] sm:$0xff]
    %v311 = vld [vmem:[%s309 + $0x8] sm:$0xff]
    %v312 = vadd.f32 %v189, %v310
    %v313 = vadd.f32 %v190, %v311
    %v314 = vmul.f32 %v60, %v310
    %v315 = vmul.f32 %v60, %v311
    %v316 = vadd.f32 %v314, %v63
    %v317 = vadd.f32 %v315, %v63
    %v318 = vmul.f32 %v66, %v307
    %v319 = vmul.f32 %v66, %v308
    %v320 = vadd.f32 %v316, %v318
    %v321 = vadd.f32 %v317, %v319
    %v322 = vadd.f32 %v320, %v70
    %v323 = vadd.f32 %v321, %v70
    %v324 = vxor.u32 %v322, 2147483648
    %v325 = vxor.u32 %v323, 2147483648
    %v326 = vmul.f32 %v324, 1.442695
    %v327 = vpow.pop %v326
    %v328 = vmul.f32 %v325, 1.442695
    %v329 = vpow.pop %v328
    %v330 = vadd.f32 %v327, 1.0
    %v331 = vadd.f32 %v329, 1.0
    %v332 = vrcp.pop %v330
    %v333 = vmul.f32 %v330, %v332
    %v334 = vsub.f32 1.0, %v333
    %v335 = vmul.f32 %v332, %v334
    %v336 = vadd.f32 %v332, %v335
    %vm337 = vweird.f32 %v330
    %vm338 = vweird.f32 %v332
    %vm339 = vmor %vm337, %vm338
    %v340 = vsel %vm339, %v332, %v336
    %v341 = vand.u32 2147483647, %v330
    %vm342 = vcmp.eq.f32.partialorder %v341, 8.507059e+37
    %v343 = vand.u32 %v330, 2147483648
    %v344 = vor.u32 1.1754944e-38, %v343
    %v345 = vsel %vm342, %v344, %v340
    %v346 = vmul.f32 1.0, %v345
    %v347 = vrcp.pop %v331
    %v348 = vmul.f32 %v331, %v347
    %v349 = vsub.f32 1.0, %v348
    %v350 = vmul.f32 %v347, %v349
    %v351 = vadd.f32 %v347, %v350
    %vm352 = vweird.f32 %v331
    %vm353 = vweird.f32 %v347
    %vm354 = vmor %vm352, %vm353
    %v355 = vsel %vm354, %v347, %v351
    %v356 = vand.u32 2147483647, %v331
    %vm357 = vcmp.eq.f32.partialorder %v356, 8.507059e+37
    %v358 = vand.u32 %v331, 2147483648
    %v359 = vor.u32 1.1754944e-38, %v358
    %v360 = vsel %vm357, %v359, %v355
    %v361 = vmul.f32 1.0, %v360
    %v362 = vmul.f32 %v111, %v310
    %v363 = vmul.f32 %v111, %v311
    %v364 = vadd.f32 %v362, %v114
    %v365 = vadd.f32 %v363, %v114
    %v366 = vmul.f32 %v117, %v307
    %v367 = vmul.f32 %v117, %v308
    %v368 = vadd.f32 %v364, %v366
    %v369 = vadd.f32 %v365, %v367
    %v370 = vadd.f32 %v368, %v121
    %v371 = vadd.f32 %v369, %v121
    %v372 = vxor.u32 %v370, 2147483648
    %v373 = vxor.u32 %v371, 2147483648
    %v374 = vmul.f32 %v372, 1.442695
    %v375 = vpow.pop %v374
    %v376 = vmul.f32 %v373, 1.442695
    %v377 = vpow.pop %v376
    %v378 = vadd.f32 %v375, 1.0
    %v379 = vadd.f32 %v377, 1.0
    %v380 = vrcp.pop %v378
    %v381 = vmul.f32 %v378, %v380
    %v382 = vsub.f32 1.0, %v381
    %v383 = vmul.f32 %v380, %v382
    %v384 = vadd.f32 %v380, %v383
    %vm385 = vweird.f32 %v378
    %vm386 = vweird.f32 %v380
    %vm387 = vmor %vm385, %vm386
    %v388 = vsel %vm387, %v380, %v384
    %v389 = vand.u32 2147483647, %v378
    %vm390 = vcmp.eq.f32.partialorder %v389, 8.507059e+37
    %v391 = vand.u32 %v378, 2147483648
    %v392 = vor.u32 1.1754944e-38, %v391
    %v393 = vsel %vm390, %v392, %v388
    %v394 = vmul.f32 1.0, %v393
    %v395 = vrcp.pop %v379
    %v396 = vmul.f32 %v379, %v395
    %v397 = vsub.f32 1.0, %v396
    %v398 = vmul.f32 %v395, %v397
    %v399 = vadd.f32 %v395, %v398
    %vm400 = vweird.f32 %v379
    %vm401 = vweird.f32 %v395
    %vm402 = vmor %vm400, %vm401
    %v403 = vsel %vm402, %v395, %v399
    %v404 = vand.u32 2147483647, %v379
    %vm405 = vcmp.eq.f32.partialorder %v404, 8.507059e+37
    %v406 = vand.u32 %v379, 2147483648
    %v407 = vor.u32 1.1754944e-38, %v406
    %v408 = vsel %vm405, %v407, %v403
    %v409 = vmul.f32 1.0, %v408
    %v410 = vmul.f32 %v162, %v310
    %v411 = vmul.f32 %v162, %v311
    %v412 = vadd.f32 %v410, %v165
    %v413 = vadd.f32 %v411, %v165
    %v414 = vmul.f32 %v168, %v307
    %v415 = vmul.f32 %v168, %v308
    %v416 = vadd.f32 %v414, %v170
    %v417 = vadd.f32 %v415, %v170
    %v418 = vmul.f32 %v346, %v416
    %v419 = vmul.f32 %v361, %v417
    %v420 = vadd.f32 %v412, %v418
    %v421 = vadd.f32 %v413, %v419
    %v422 = vtanh.pop %v420
    %v423 = vtanh.pop %v421
    %v424 = vsub.f32 1.0, %v394
    %v425 = vsub.f32 1.0, %v409
    %v426 = vmul.f32 %v424, %v422
    %v427 = vmul.f32 %v425, %v423
    %v428 = vmul.f32 %v394, %v307
    %v429 = vmul.f32 %v409, %v308
    %v430 = vadd.f32 %v426, %v428
    %v431 = vadd.f32 %v427, %v429
    %s432 = scalar_lea.vmem [#allocation2], 48
    %v433 = vld [vmem:[%s432] sm:$0xff]
    %v434 = vld [vmem:[%s432 + $0x8] sm:$0xff]
    %v435 = vadd.f32 %v312, %v433
    %v436 = vadd.f32 %v313, %v434
    %v437 = vmul.f32 %v60, %v433
    %v438 = vmul.f32 %v60, %v434
    %v439 = vadd.f32 %v437, %v63
    %v440 = vadd.f32 %v438, %v63
    %v441 = vmul.f32 %v66, %v430
    %v442 = vmul.f32 %v66, %v431
    %v443 = vadd.f32 %v439, %v441
    %v444 = vadd.f32 %v440, %v442
    %v445 = vadd.f32 %v443, %v70
    %v446 = vadd.f32 %v444, %v70
    %v447 = vxor.u32 %v445, 2147483648
    %v448 = vxor.u32 %v446, 2147483648
    %v449 = vmul.f32 %v447, 1.442695
    %v450 = vpow.pop %v449
    %v451 = vmul.f32 %v448, 1.442695
    %v452 = vpow.pop %v451
    %v453 = vadd.f32 %v450, 1.0
    %v454 = vadd.f32 %v452, 1.0
    %v455 = vrcp.pop %v453
    %v456 = vmul.f32 %v453, %v455
    %v457 = vsub.f32 1.0, %v456
    %v458 = vmul.f32 %v455, %v457
    %v459 = vadd.f32 %v455, %v458
    %vm460 = vweird.f32 %v453
    %vm461 = vweird.f32 %v455
    %vm462 = vmor %vm460, %vm461
    %v463 = vsel %vm462, %v455, %v459
    %v464 = vand.u32 2147483647, %v453
    %vm465 = vcmp.eq.f32.partialorder %v464, 8.507059e+37
    %v466 = vand.u32 %v453, 2147483648
    %v467 = vor.u32 1.1754944e-38, %v466
    %v468 = vsel %vm465, %v467, %v463
    %v469 = vmul.f32 1.0, %v468
    %v470 = vrcp.pop %v454
    %v471 = vmul.f32 %v454, %v470
    %v472 = vsub.f32 1.0, %v471
    %v473 = vmul.f32 %v470, %v472
    %v474 = vadd.f32 %v470, %v473
    %vm475 = vweird.f32 %v454
    %vm476 = vweird.f32 %v470
    %vm477 = vmor %vm475, %vm476
    %v478 = vsel %vm477, %v470, %v474
    %v479 = vand.u32 2147483647, %v454
    %vm480 = vcmp.eq.f32.partialorder %v479, 8.507059e+37
    %v481 = vand.u32 %v454, 2147483648
    %v482 = vor.u32 1.1754944e-38, %v481
    %v483 = vsel %vm480, %v482, %v478
    %v484 = vmul.f32 1.0, %v483
    %v485 = vmul.f32 %v111, %v433
    %v486 = vmul.f32 %v111, %v434
    %v487 = vadd.f32 %v485, %v114
    %v488 = vadd.f32 %v486, %v114
    %v489 = vmul.f32 %v117, %v430
    %v490 = vmul.f32 %v117, %v431
    %v491 = vadd.f32 %v487, %v489
    %v492 = vadd.f32 %v488, %v490
    %v493 = vadd.f32 %v491, %v121
    %v494 = vadd.f32 %v492, %v121
    %v495 = vxor.u32 %v493, 2147483648
    %v496 = vxor.u32 %v494, 2147483648
    %v497 = vmul.f32 %v495, 1.442695
    %v498 = vpow.pop %v497
    %v499 = vmul.f32 %v496, 1.442695
    %v500 = vpow.pop %v499
    %v501 = vadd.f32 %v498, 1.0
    %v502 = vadd.f32 %v500, 1.0
    %v503 = vrcp.pop %v501
    %v504 = vmul.f32 %v501, %v503
    %v505 = vsub.f32 1.0, %v504
    %v506 = vmul.f32 %v503, %v505
    %v507 = vadd.f32 %v503, %v506
    %vm508 = vweird.f32 %v501
    %vm509 = vweird.f32 %v503
    %vm510 = vmor %vm508, %vm509
    %v511 = vsel %vm510, %v503, %v507
    %v512 = vand.u32 2147483647, %v501
    %vm513 = vcmp.eq.f32.partialorder %v512, 8.507059e+37
    %v514 = vand.u32 %v501, 2147483648
    %v515 = vor.u32 1.1754944e-38, %v514
    %v516 = vsel %vm513, %v515, %v511
    %v517 = vmul.f32 1.0, %v516
    %v518 = vrcp.pop %v502
    %v519 = vmul.f32 %v502, %v518
    %v520 = vsub.f32 1.0, %v519
    %v521 = vmul.f32 %v518, %v520
    %v522 = vadd.f32 %v518, %v521
    %vm523 = vweird.f32 %v502
    %vm524 = vweird.f32 %v518
    %vm525 = vmor %vm523, %vm524
    %v526 = vsel %vm525, %v518, %v522
    %v527 = vand.u32 2147483647, %v502
    %vm528 = vcmp.eq.f32.partialorder %v527, 8.507059e+37
    %v529 = vand.u32 %v502, 2147483648
    %v530 = vor.u32 1.1754944e-38, %v529
    %v531 = vsel %vm528, %v530, %v526
    %v532 = vmul.f32 1.0, %v531
    %v533 = vmul.f32 %v162, %v433
    %v534 = vmul.f32 %v162, %v434
    %v535 = vadd.f32 %v533, %v165
    %v536 = vadd.f32 %v534, %v165
    %v537 = vmul.f32 %v168, %v430
    %v538 = vmul.f32 %v168, %v431
    %v539 = vadd.f32 %v537, %v170
    %v540 = vadd.f32 %v538, %v170
    %v541 = vmul.f32 %v469, %v539
    %v542 = vmul.f32 %v484, %v540
    %v543 = vadd.f32 %v535, %v541
    %v544 = vadd.f32 %v536, %v542
    %v545 = vtanh.pop %v543
    %v546 = vtanh.pop %v544
    %v547 = vsub.f32 1.0, %v517
    %v548 = vsub.f32 1.0, %v532
    %v549 = vmul.f32 %v547, %v545
    %v550 = vmul.f32 %v548, %v546
    %v551 = vmul.f32 %v517, %v430
    %v552 = vmul.f32 %v532, %v431
    %v553 = vadd.f32 %v549, %v551
    %v554 = vadd.f32 %v550, %v552
    %s555 = scalar_lea.vmem [#allocation2], 64
    %v556 = vld [vmem:[%s555] sm:$0xff]
    %v557 = vld [vmem:[%s555 + $0x8] sm:$0xff]
    %v558 = vadd.f32 %v435, %v556
    %v559 = vadd.f32 %v436, %v557
    %v560 = vmul.f32 %v60, %v556
    %v561 = vmul.f32 %v60, %v557
    %v562 = vadd.f32 %v560, %v63
    %v563 = vadd.f32 %v561, %v63
    %v564 = vmul.f32 %v66, %v553
    %v565 = vmul.f32 %v66, %v554
    %v566 = vadd.f32 %v562, %v564
    %v567 = vadd.f32 %v563, %v565
    %v568 = vadd.f32 %v566, %v70
    %v569 = vadd.f32 %v567, %v70
    %v570 = vxor.u32 %v568, 2147483648
    %v571 = vxor.u32 %v569, 2147483648
    %v572 = vmul.f32 %v570, 1.442695
    %v573 = vpow.pop %v572
    %v574 = vmul.f32 %v571, 1.442695
    %v575 = vpow.pop %v574
    %v576 = vadd.f32 %v573, 1.0
    %v577 = vadd.f32 %v575, 1.0
    %v578 = vrcp.pop %v576
    %v579 = vmul.f32 %v576, %v578
    %v580 = vsub.f32 1.0, %v579
    %v581 = vmul.f32 %v578, %v580
    %v582 = vadd.f32 %v578, %v581
    %vm583 = vweird.f32 %v576
    %vm584 = vweird.f32 %v578
    %vm585 = vmor %vm583, %vm584
    %v586 = vsel %vm585, %v578, %v582
    %v587 = vand.u32 2147483647, %v576
    %vm588 = vcmp.eq.f32.partialorder %v587, 8.507059e+37
    %v589 = vand.u32 %v576, 2147483648
    %v590 = vor.u32 1.1754944e-38, %v589
    %v591 = vsel %vm588, %v590, %v586
    %v592 = vmul.f32 1.0, %v591
    %v593 = vrcp.pop %v577
    %v594 = vmul.f32 %v577, %v593
    %v595 = vsub.f32 1.0, %v594
    %v596 = vmul.f32 %v593, %v595
    %v597 = vadd.f32 %v593, %v596
    %vm598 = vweird.f32 %v577
    %vm599 = vweird.f32 %v593
    %vm600 = vmor %vm598, %vm599
    %v601 = vsel %vm600, %v593, %v597
    %v602 = vand.u32 2147483647, %v577
    %vm603 = vcmp.eq.f32.partialorder %v602, 8.507059e+37
    %v604 = vand.u32 %v577, 2147483648
    %v605 = vor.u32 1.1754944e-38, %v604
    %v606 = vsel %vm603, %v605, %v601
    %v607 = vmul.f32 1.0, %v606
    %v608 = vmul.f32 %v111, %v556
    %v609 = vmul.f32 %v111, %v557
    %v610 = vadd.f32 %v608, %v114
    %v611 = vadd.f32 %v609, %v114
    %v612 = vmul.f32 %v117, %v553
    %v613 = vmul.f32 %v117, %v554
    %v614 = vadd.f32 %v610, %v612
    %v615 = vadd.f32 %v611, %v613
    %v616 = vadd.f32 %v614, %v121
    %v617 = vadd.f32 %v615, %v121
    %v618 = vxor.u32 %v616, 2147483648
    %v619 = vxor.u32 %v617, 2147483648
    %v620 = vmul.f32 %v618, 1.442695
    %v621 = vpow.pop %v620
    %v622 = vmul.f32 %v619, 1.442695
    %v623 = vpow.pop %v622
    %v624 = vadd.f32 %v621, 1.0
    %v625 = vadd.f32 %v623, 1.0
    %v626 = vrcp.pop %v624
    %v627 = vmul.f32 %v624, %v626
    %v628 = vsub.f32 1.0, %v627
    %v629 = vmul.f32 %v626, %v628
    %v630 = vadd.f32 %v626, %v629
    %vm631 = vweird.f32 %v624
    %vm632 = vweird.f32 %v626
    %vm633 = vmor %vm631, %vm632
    %v634 = vsel %vm633, %v626, %v630
    %v635 = vand.u32 2147483647, %v624
    %vm636 = vcmp.eq.f32.partialorder %v635, 8.507059e+37
    %v637 = vand.u32 %v624, 2147483648
    %v638 = vor.u32 1.1754944e-38, %v637
    %v639 = vsel %vm636, %v638, %v634
    %v640 = vmul.f32 1.0, %v639
    %v641 = vrcp.pop %v625
    %v642 = vmul.f32 %v625, %v641
    %v643 = vsub.f32 1.0, %v642
    %v644 = vmul.f32 %v641, %v643
    %v645 = vadd.f32 %v641, %v644
    %vm646 = vweird.f32 %v625
    %vm647 = vweird.f32 %v641
    %vm648 = vmor %vm646, %vm647
    %v649 = vsel %vm648, %v641, %v645
    %v650 = vand.u32 2147483647, %v625
    %vm651 = vcmp.eq.f32.partialorder %v650, 8.507059e+37
    %v652 = vand.u32 %v625, 2147483648
    %v653 = vor.u32 1.1754944e-38, %v652
    %v654 = vsel %vm651, %v653, %v649
    %v655 = vmul.f32 1.0, %v654
    %v656 = vmul.f32 %v162, %v556
    %v657 = vmul.f32 %v162, %v557
    %v658 = vadd.f32 %v656, %v165
    %v659 = vadd.f32 %v657, %v165
    %v660 = vmul.f32 %v168, %v553
    %v661 = vmul.f32 %v168, %v554
    %v662 = vadd.f32 %v660, %v170
    %v663 = vadd.f32 %v661, %v170
    %v664 = vmul.f32 %v592, %v662
    %v665 = vmul.f32 %v607, %v663
    %v666 = vadd.f32 %v658, %v664
    %v667 = vadd.f32 %v659, %v665
    %v668 = vtanh.pop %v666
    %v669 = vtanh.pop %v667
    %v670 = vsub.f32 1.0, %v640
    %v671 = vsub.f32 1.0, %v655
    %v672 = vmul.f32 %v670, %v668
    %v673 = vmul.f32 %v671, %v669
    %v674 = vmul.f32 %v640, %v553
    %v675 = vmul.f32 %v655, %v554
    %v676 = vadd.f32 %v672, %v674
    %v677 = vadd.f32 %v673, %v675
    %s678 = scalar_lea.vmem [#allocation2], 80
    %v679 = vld [vmem:[%s678] sm:$0xff]
    %v680 = vld [vmem:[%s678 + $0x8] sm:$0xff]
    %v681 = vadd.f32 %v558, %v679
    %v682 = vadd.f32 %v559, %v680
    %v683 = vmul.f32 %v60, %v679
    %v684 = vmul.f32 %v60, %v680
    %v685 = vadd.f32 %v683, %v63
    %v686 = vadd.f32 %v684, %v63
    %v687 = vmul.f32 %v66, %v676
    %v688 = vmul.f32 %v66, %v677
    %v689 = vadd.f32 %v685, %v687
    %v690 = vadd.f32 %v686, %v688
    %v691 = vadd.f32 %v689, %v70
    %v692 = vadd.f32 %v690, %v70
    %v693 = vxor.u32 %v691, 2147483648
    %v694 = vxor.u32 %v692, 2147483648
    %v695 = vmul.f32 %v693, 1.442695
    %v696 = vpow.pop %v695
    %v697 = vmul.f32 %v694, 1.442695
    %v698 = vpow.pop %v697
    %v699 = vadd.f32 %v696, 1.0
    %v700 = vadd.f32 %v698, 1.0
    %v701 = vrcp.pop %v699
    %v702 = vmul.f32 %v699, %v701
    %v703 = vsub.f32 1.0, %v702
    %v704 = vmul.f32 %v701, %v703
    %v705 = vadd.f32 %v701, %v704
    %vm706 = vweird.f32 %v699
    %vm707 = vweird.f32 %v701
    %vm708 = vmor %vm706, %vm707
    %v709 = vsel %vm708, %v701, %v705
    %v710 = vand.u32 2147483647, %v699
    %vm711 = vcmp.eq.f32.partialorder %v710, 8.507059e+37
    %v712 = vand.u32 %v699, 2147483648
    %v713 = vor.u32 1.1754944e-38, %v712
    %v714 = vsel %vm711, %v713, %v709
    %v715 = vmul.f32 1.0, %v714
    %v716 = vrcp.pop %v700
    %v717 = vmul.f32 %v700, %v716
    %v718 = vsub.f32 1.0, %v717
    %v719 = vmul.f32 %v716, %v718
    %v720 = vadd.f32 %v716, %v719
    %vm721 = vweird.f32 %v700
    %vm722 = vweird.f32 %v716
    %vm723 = vmor %vm721, %vm722
    %v724 = vsel %vm723, %v716, %v720
    %v725 = vand.u32 2147483647, %v700
    %vm726 = vcmp.eq.f32.partialorder %v725, 8.507059e+37
    %v727 = vand.u32 %v700, 2147483648
    %v728 = vor.u32 1.1754944e-38, %v727
    %v729 = vsel %vm726, %v728, %v724
    %v730 = vmul.f32 1.0, %v729
    %v731 = vmul.f32 %v111, %v679
    %v732 = vmul.f32 %v111, %v680
    %v733 = vadd.f32 %v731, %v114
    %v734 = vadd.f32 %v732, %v114
    %v735 = vmul.f32 %v117, %v676
    %v736 = vmul.f32 %v117, %v677
    %v737 = vadd.f32 %v733, %v735
    %v738 = vadd.f32 %v734, %v736
    %v739 = vadd.f32 %v737, %v121
    %v740 = vadd.f32 %v738, %v121
    %v741 = vxor.u32 %v739, 2147483648
    %v742 = vxor.u32 %v740, 2147483648
    %v743 = vmul.f32 %v741, 1.442695
    %v744 = vpow.pop %v743
    %v745 = vmul.f32 %v742, 1.442695
    %v746 = vpow.pop %v745
    %v747 = vadd.f32 %v744, 1.0
    %v748 = vadd.f32 %v746, 1.0
    %v749 = vrcp.pop %v747
    %v750 = vmul.f32 %v747, %v749
    %v751 = vsub.f32 1.0, %v750
    %v752 = vmul.f32 %v749, %v751
    %v753 = vadd.f32 %v749, %v752
    %vm754 = vweird.f32 %v747
    %vm755 = vweird.f32 %v749
    %vm756 = vmor %vm754, %vm755
    %v757 = vsel %vm756, %v749, %v753
    %v758 = vand.u32 2147483647, %v747
    %vm759 = vcmp.eq.f32.partialorder %v758, 8.507059e+37
    %v760 = vand.u32 %v747, 2147483648
    %v761 = vor.u32 1.1754944e-38, %v760
    %v762 = vsel %vm759, %v761, %v757
    %v763 = vmul.f32 1.0, %v762
    %v764 = vrcp.pop %v748
    %v765 = vmul.f32 %v748, %v764
    %v766 = vsub.f32 1.0, %v765
    %v767 = vmul.f32 %v764, %v766
    %v768 = vadd.f32 %v764, %v767
    %vm769 = vweird.f32 %v748
    %vm770 = vweird.f32 %v764
    %vm771 = vmor %vm769, %vm770
    %v772 = vsel %vm771, %v764, %v768
    %v773 = vand.u32 2147483647, %v748
    %vm774 = vcmp.eq.f32.partialorder %v773, 8.507059e+37
    %v775 = vand.u32 %v748, 2147483648
    %v776 = vor.u32 1.1754944e-38, %v775
    %v777 = vsel %vm774, %v776, %v772
    %v778 = vmul.f32 1.0, %v777
    %v779 = vmul.f32 %v162, %v679
    %v780 = vmul.f32 %v162, %v680
    %v781 = vadd.f32 %v779, %v165
    %v782 = vadd.f32 %v780, %v165
    %v783 = vmul.f32 %v168, %v676
    %v784 = vmul.f32 %v168, %v677
    %v785 = vadd.f32 %v783, %v170
    %v786 = vadd.f32 %v784, %v170
    %v787 = vmul.f32 %v715, %v785
    %v788 = vmul.f32 %v730, %v786
    %v789 = vadd.f32 %v781, %v787
    %v790 = vadd.f32 %v782, %v788
    %v791 = vtanh.pop %v789
    %v792 = vtanh.pop %v790
    %v793 = vsub.f32 1.0, %v763
    %v794 = vsub.f32 1.0, %v778
    %v795 = vmul.f32 %v793, %v791
    %v796 = vmul.f32 %v794, %v792
    %v797 = vmul.f32 %v763, %v676
    %v798 = vmul.f32 %v778, %v677
    %v799 = vadd.f32 %v795, %v797
    %v800 = vadd.f32 %v796, %v798
    %s801 = scalar_lea.vmem [#allocation2], 96
    %v802 = vld [vmem:[%s801] sm:$0xff]
    %v803 = vld [vmem:[%s801 + $0x8] sm:$0xff]
    %v804 = vadd.f32 %v681, %v802
    %v805 = vadd.f32 %v682, %v803
    %v806 = vmul.f32 %v60, %v802
    %v807 = vmul.f32 %v60, %v803
    %v808 = vadd.f32 %v806, %v63
    %v809 = vadd.f32 %v807, %v63
    %v810 = vmul.f32 %v66, %v799
    %v811 = vmul.f32 %v66, %v800
    %v812 = vadd.f32 %v808, %v810
    %v813 = vadd.f32 %v809, %v811
    %v814 = vadd.f32 %v812, %v70
    %v815 = vadd.f32 %v813, %v70
    %v816 = vxor.u32 %v814, 2147483648
    %v817 = vxor.u32 %v815, 2147483648
    %v818 = vmul.f32 %v816, 1.442695
    %v819 = vpow.pop %v818
    %v820 = vmul.f32 %v817, 1.442695
    %v821 = vpow.pop %v820
    %v822 = vadd.f32 %v819, 1.0
    %v823 = vadd.f32 %v821, 1.0
    %v824 = vrcp.pop %v822
    %v825 = vmul.f32 %v822, %v824
    %v826 = vsub.f32 1.0, %v825
    %v827 = vmul.f32 %v824, %v826
    %v828 = vadd.f32 %v824, %v827
    %vm829 = vweird.f32 %v822
    %vm830 = vweird.f32 %v824
    %vm831 = vmor %vm829, %vm830
    %v832 = vsel %vm831, %v824, %v828
    %v833 = vand.u32 2147483647, %v822
    %vm834 = vcmp.eq.f32.partialorder %v833, 8.507059e+37
    %v835 = vand.u32 %v822, 2147483648
    %v836 = vor.u32 1.1754944e-38, %v835
    %v837 = vsel %vm834, %v836, %v832
    %v838 = vmul.f32 1.0, %v837
    %v839 = vrcp.pop %v823
    %v840 = vmul.f32 %v823, %v839
    %v841 = vsub.f32 1.0, %v840
    %v842 = vmul.f32 %v839, %v841
    %v843 = vadd.f32 %v839, %v842
    %vm844 = vweird.f32 %v823
    %vm845 = vweird.f32 %v839
    %vm846 = vmor %vm844, %vm845
    %v847 = vsel %vm846, %v839, %v843
    %v848 = vand.u32 2147483647, %v823
    %vm849 = vcmp.eq.f32.partialorder %v848, 8.507059e+37
    %v850 = vand.u32 %v823, 2147483648
    %v851 = vor.u32 1.1754944e-38, %v850
    %v852 = vsel %vm849, %v851, %v847
    %v853 = vmul.f32 1.0, %v852
    %v854 = vmul.f32 %v111, %v802
    %v855 = vmul.f32 %v111, %v803
    %v856 = vadd.f32 %v854, %v114
    %v857 = vadd.f32 %v855, %v114
    %v858 = vmul.f32 %v117, %v799
    %v859 = vmul.f32 %v117, %v800
    %v860 = vadd.f32 %v856, %v858
    %v861 = vadd.f32 %v857, %v859
    %v862 = vadd.f32 %v860, %v121
    %v863 = vadd.f32 %v861, %v121
    %v864 = vxor.u32 %v862, 2147483648
    %v865 = vxor.u32 %v863, 2147483648
    %v866 = vmul.f32 %v864, 1.442695
    %v867 = vpow.pop %v866
    %v868 = vmul.f32 %v865, 1.442695
    %v869 = vpow.pop %v868
    %v870 = vadd.f32 %v867, 1.0
    %v871 = vadd.f32 %v869, 1.0
    %v872 = vrcp.pop %v870
    %v873 = vmul.f32 %v870, %v872
    %v874 = vsub.f32 1.0, %v873
    %v875 = vmul.f32 %v872, %v874
    %v876 = vadd.f32 %v872, %v875
    %vm877 = vweird.f32 %v870
    %vm878 = vweird.f32 %v872
    %vm879 = vmor %vm877, %vm878
    %v880 = vsel %vm879, %v872, %v876
    %v881 = vand.u32 2147483647, %v870
    %vm882 = vcmp.eq.f32.partialorder %v881, 8.507059e+37
    %v883 = vand.u32 %v870, 2147483648
    %v884 = vor.u32 1.1754944e-38, %v883
    %v885 = vsel %vm882, %v884, %v880
    %v886 = vmul.f32 1.0, %v885
    %v887 = vrcp.pop %v871
    %v888 = vmul.f32 %v871, %v887
    %v889 = vsub.f32 1.0, %v888
    %v890 = vmul.f32 %v887, %v889
    %v891 = vadd.f32 %v887, %v890
    %vm892 = vweird.f32 %v871
    %vm893 = vweird.f32 %v887
    %vm894 = vmor %vm892, %vm893
    %v895 = vsel %vm894, %v887, %v891
    %v896 = vand.u32 2147483647, %v871
    %vm897 = vcmp.eq.f32.partialorder %v896, 8.507059e+37
    %v898 = vand.u32 %v871, 2147483648
    %v899 = vor.u32 1.1754944e-38, %v898
    %v900 = vsel %vm897, %v899, %v895
    %v901 = vmul.f32 1.0, %v900
    %v902 = vmul.f32 %v162, %v802
    %v903 = vmul.f32 %v162, %v803
    %v904 = vadd.f32 %v902, %v165
    %v905 = vadd.f32 %v903, %v165
    %v906 = vmul.f32 %v168, %v799
    %v907 = vmul.f32 %v168, %v800
    %v908 = vadd.f32 %v906, %v170
    %v909 = vadd.f32 %v907, %v170
    %v910 = vmul.f32 %v838, %v908
    %v911 = vmul.f32 %v853, %v909
    %v912 = vadd.f32 %v904, %v910
    %v913 = vadd.f32 %v905, %v911
    %v914 = vtanh.pop %v912
    %v915 = vtanh.pop %v913
    %v916 = vsub.f32 1.0, %v886
    %v917 = vsub.f32 1.0, %v901
    %v918 = vmul.f32 %v916, %v914
    %v919 = vmul.f32 %v917, %v915
    %v920 = vmul.f32 %v886, %v799
    %v921 = vmul.f32 %v901, %v800
    %v922 = vadd.f32 %v918, %v920
    %v923 = vadd.f32 %v919, %v921
    %s924 = scalar_lea.vmem [#allocation2], 112
    %v925 = vld [vmem:[%s924] sm:$0xff]
    %v926 = vld [vmem:[%s924 + $0x8] sm:$0xff]
    %v927 = vadd.f32 %v804, %v925
    %v928 = vadd.f32 %v805, %v926
    %v929 = vmul.f32 %v60, %v925
    %v930 = vmul.f32 %v60, %v926
    %v931 = vadd.f32 %v929, %v63
    %v932 = vadd.f32 %v930, %v63
    %v933 = vmul.f32 %v66, %v922
    %v934 = vmul.f32 %v66, %v923
    %v935 = vadd.f32 %v931, %v933
    %v936 = vadd.f32 %v932, %v934
    %v937 = vadd.f32 %v935, %v70
    %v938 = vadd.f32 %v936, %v70
    %v939 = vxor.u32 %v937, 2147483648
    %v940 = vxor.u32 %v938, 2147483648
    %v941 = vmul.f32 %v939, 1.442695
    %v942 = vpow.pop %v941
    %v943 = vmul.f32 %v940, 1.442695
    %v944 = vpow.pop %v943
    %v945 = vadd.f32 %v942, 1.0
    %v946 = vadd.f32 %v944, 1.0
    %v947 = vrcp.pop %v945
    %v948 = vmul.f32 %v945, %v947
    %v949 = vsub.f32 1.0, %v948
    %v950 = vmul.f32 %v947, %v949
    %v951 = vadd.f32 %v947, %v950
    %vm952 = vweird.f32 %v945
    %vm953 = vweird.f32 %v947
    %vm954 = vmor %vm952, %vm953
    %v955 = vsel %vm954, %v947, %v951
    %v956 = vand.u32 2147483647, %v945
    %vm957 = vcmp.eq.f32.partialorder %v956, 8.507059e+37
    %v958 = vand.u32 %v945, 2147483648
    %v959 = vor.u32 1.1754944e-38, %v958
    %v960 = vsel %vm957, %v959, %v955
    %v961 = vmul.f32 1.0, %v960
    %v962 = vrcp.pop %v946
    %v963 = vmul.f32 %v946, %v962
    %v964 = vsub.f32 1.0, %v963
    %v965 = vmul.f32 %v962, %v964
    %v966 = vadd.f32 %v962, %v965
    %vm967 = vweird.f32 %v946
    %vm968 = vweird.f32 %v962
    %vm969 = vmor %vm967, %vm968
    %v970 = vsel %vm969, %v962, %v966
    %v971 = vand.u32 2147483647, %v946
    %vm972 = vcmp.eq.f32.partialorder %v971, 8.507059e+37
    %v973 = vand.u32 %v946, 2147483648
    %v974 = vor.u32 1.1754944e-38, %v973
    %v975 = vsel %vm972, %v974, %v970
    %v976 = vmul.f32 1.0, %v975
    %v977 = vmul.f32 %v111, %v925
    %v978 = vmul.f32 %v111, %v926
    %v979 = vadd.f32 %v977, %v114
    %v980 = vadd.f32 %v978, %v114
    %v981 = vmul.f32 %v117, %v922
    %v982 = vmul.f32 %v117, %v923
    %v983 = vadd.f32 %v979, %v981
    %v984 = vadd.f32 %v980, %v982
    %v985 = vadd.f32 %v983, %v121
    %v986 = vadd.f32 %v984, %v121
    %v987 = vxor.u32 %v985, 2147483648
    %v988 = vxor.u32 %v986, 2147483648
    %v989 = vmul.f32 %v987, 1.442695
    %v990 = vpow.pop %v989
    %v991 = vmul.f32 %v988, 1.442695
    %v992 = vpow.pop %v991
    %v993 = vadd.f32 %v990, 1.0
    %v994 = vadd.f32 %v992, 1.0
    %v995 = vrcp.pop %v993
    %v996 = vmul.f32 %v993, %v995
    %v997 = vsub.f32 1.0, %v996
    %v998 = vmul.f32 %v995, %v997
    %v999 = vadd.f32 %v995, %v998
    %vm1000 = vweird.f32 %v993
    %vm1001 = vweird.f32 %v995
    %vm1002 = vmor %vm1000, %vm1001
    %v1003 = vsel %vm1002, %v995, %v999
    %v1004 = vand.u32 2147483647, %v993
    %vm1005 = vcmp.eq.f32.partialorder %v1004, 8.507059e+37
    %v1006 = vand.u32 %v993, 2147483648
    %v1007 = vor.u32 1.1754944e-38, %v1006
    %v1008 = vsel %vm1005, %v1007, %v1003
    %v1009 = vmul.f32 1.0, %v1008
    %v1010 = vrcp.pop %v994
    %v1011 = vmul.f32 %v994, %v1010
    %v1012 = vsub.f32 1.0, %v1011
    %v1013 = vmul.f32 %v1010, %v1012
    %v1014 = vadd.f32 %v1010, %v1013
    %vm1015 = vweird.f32 %v994
    %vm1016 = vweird.f32 %v1010
    %vm1017 = vmor %vm1015, %vm1016
    %v1018 = vsel %vm1017, %v1010, %v1014
    %v1019 = vand.u32 2147483647, %v994
    %vm1020 = vcmp.eq.f32.partialorder %v1019, 8.507059e+37
    %v1021 = vand.u32 %v994, 2147483648
    %v1022 = vor.u32 1.1754944e-38, %v1021
    %v1023 = vsel %vm1020, %v1022, %v1018
    %v1024 = vmul.f32 1.0, %v1023
    %v1025 = vmul.f32 %v162, %v925
    %v1026 = vmul.f32 %v162, %v926
    %v1027 = vadd.f32 %v1025, %v165
    %v1028 = vadd.f32 %v1026, %v165
    %v1029 = vmul.f32 %v168, %v922
    %v1030 = vmul.f32 %v168, %v923
    %v1031 = vadd.f32 %v1029, %v170
    %v1032 = vadd.f32 %v1030, %v170
    %v1033 = vmul.f32 %v961, %v1031
    %v1034 = vmul.f32 %v976, %v1032
    %v1035 = vadd.f32 %v1027, %v1033
    %v1036 = vadd.f32 %v1028, %v1034
    %v1037 = vtanh.pop %v1035
    %v1038 = vtanh.pop %v1036
    %v1039 = vsub.f32 1.0, %v1009
    %v1040 = vsub.f32 1.0, %v1024
    %v1041 = vmul.f32 %v1039, %v1037
    %v1042 = vmul.f32 %v1040, %v1038
    %v1043 = vmul.f32 %v1009, %v922
    %v1044 = vmul.f32 %v1024, %v923
    %v1045 = vadd.f32 %v1041, %v1043
    %v1046 = vadd.f32 %v1042, %v1044
    %1047 = vst [vmem:[#allocation7] sm:$0xff] %v1045
    %1048 = vst [vmem:[#allocation7 + $0x8] sm:$0xff] %v1046
    %v1049 = vmul.f32 %v927, 0.125
    %v1050 = vmul.f32 %v928, 0.125
    %1051 = vst [vmem:[#allocation8] sm:$0xff] %v1049
    %1052 = vst [vmem:[#allocation8 + $0x8] sm:$0xff] %v1050
    // Predicated region
    $region18: #{tpu_custom_call.1} parent=1 // pred_check
      _
    $region19: #{tpu_custom_call.1} parent=1 // pred_check_branch
      %1054 = sbr.rel (0) target = $region21
    $region20: #{tpu_custom_call.1} parent=1 // pred_region
      %1056 = vsyncadd [#allocation4], 0
      %s1057 = sshll.u32 [#allocation7], 4
      %s1058 = int_to_ptr.vmem [resolvable:$true] %s1057
      %s1059 = sshll.u32 %s2, 4
      %s1060 = int_to_ptr.hbm [resolvable:$true] %s1059
      %1065 = dma.vmem_to_hbm [thread:$0]  %s1058, 256, %s1060, [#allocation4], 128, 128, 8
    $region21: #{tpu_custom_call.1} parent=1 // pred_fallthru
      _
    // Predicated region
    $region22: #{tpu_custom_call.1} parent=1 // pred_check
      _
    $region23: #{tpu_custom_call.1} parent=1 // pred_check_branch
      %1067 = sbr.rel (0) target = $region25
    $region24: #{tpu_custom_call.1} parent=1 // pred_region
      %1069 = vsyncadd [#allocation9], 0
      %s1070 = sshll.u32 [#allocation8], 4
      %s1071 = int_to_ptr.vmem [resolvable:$true] %s1070
      %s1072 = sshll.u32 %s3, 4
      %s1073 = int_to_ptr.hbm [resolvable:$true] %s1072
      %1078 = dma.vmem_to_hbm [thread:$0]  %s1071, 256, %s1073, [#allocation9], 128, 128, 8
    $region25: #{tpu_custom_call.1} parent=1 // pred_fallthru
      _
    // Predicated region
    $region26: #{tpu_custom_call.1} parent=1 // pred_check
      _
    $region27: #{tpu_custom_call.1} parent=1 // pred_check_branch
      %1080 = sbr.rel (0) target = $region29
    $region28: #{tpu_custom_call.1} parent=1 // pred_region
      %1082 = dma.done [#allocation4], 256
    $region29: #{tpu_custom_call.1} parent=1 // pred_fallthru
      _
    // Predicated region
    $region30: #{tpu_custom_call.1} parent=1 // pred_check
      _
    $region31: #{tpu_custom_call.1} parent=1 // pred_check_branch
      %1084 = sbr.rel (0) target = $region33
    $region32: #{tpu_custom_call.1} parent=1 // pred_region
      %1086 = dma.done [#allocation9], 256
    $region33: #{tpu_custom_call.1} parent=1 // pred_fallthru
      _
    %1087 = vsyncpa [#allocation3], 1
    %1088 = vsyncpa [#allocation4], 1
    %1089 = vsyncpa [#allocation9], 1
    %1090 = vsyncpa [#allocation5], 1

</llo_original>
